<compile_context>
chip_gen: v7x
topology: tpu7x:2x2x1
jax: 0.10.0
libtpu: 0.0.40
codegen_flags: <defaults>
</compile_context>

<pallas_src>
import jax
import jax.numpy as jnp
from jax.experimental import pallas as pl
from jax.experimental.pallas import tpu as pltpu

# Same explicit matmul precision in kernel and reference so the correctness
# check is tight without forcing multi-pass f32 emulation on the MXU.
PREC = jax.lax.Precision.DEFAULT


def _bilstm_kernel(x_ref, len_ref, wih_ref, whh_ref, b_ref, out_ref, gx_scr):
    TB = x_ref.shape[0]          # T * B rows of pre-blended input
    H8 = wih_ref.shape[1]        # 8 * hidden  (4 gates x 2 directions)
    H = H8 // 8
    H2 = 2 * H
    B = len_ref.shape[0]
    T = TB // B

    # ---- input projection for both directions / both time orders: one big
    # lane-dense MXU matmul, stored once (outside the recurrence). ----
    gx = jnp.dot(x_ref[...], wih_ref[...], precision=PREC,
                 preferred_element_type=jnp.float32) + b_ref[...]   # (T*B, 8H)
    gx_scr[...] = gx.reshape(T, B, H8)

    whh = whh_ref[...]           # (2H, 8H) block-diagonal recurrent weight
    lens = len_ref[...]          # (B, 1) int32

    # Lane mask (hoisted): first H lanes of the (B, 2H) state are forward.
    is_fwd = jax.lax.broadcasted_iota(jnp.int32, (B, H2), 1) < H

    zeros = jnp.zeros((B, H2), jnp.float32)

    def step(s, carry):
        h, c = carry             # (B, 2H) = [fwd | bwd]
        t_b = T - 1 - s          # backward-direction time index for this step

        # Row s already holds [fwd gates of time s | bwd gates of time T-1-s].
        # Single block-diagonal recurrent matmul covers both directions.
        g = gx_scr[s] + jnp.dot(h, whh, precision=PREC,
                                preferred_element_type=jnp.float32)  # (B, 8H)

        # Gate layout (i, f, o, g) x (fwd, bwd): one sigmoid + one tanh.
        sfo = jax.nn.sigmoid(g[:, :6 * H])
        i = sfo[:, :H2]
        f = sfo[:, H2:2 * H2]
        o = sfo[:, 2 * H2:3 * H2]
        gg = jnp.tanh(g[:, 6 * H:])

        c_new = f * c + i * gg
        h_new = o * jnp.tanh(c_new)

        # pack/pad semantics: freeze state and zero outputs past each length.
        t_lane = jnp.where(is_fwd, s, t_b)      # per-lane time index (B, 2H)
        valid = lens > t_lane                   # (B, 2H) bool, built in-kernel
        out_ref[s] = jnp.where(valid, h_new, 0.0)
        h = jnp.where(valid, h_new, h)
        c = jnp.where(valid, c_new, c)
        return h, c

    unroll = True if T <= 32 else 8             # full unroll for short T
    jax.lax.fori_loop(0, T, step, (zeros, zeros), unroll=unroll)


def encoder_forward(inputs, seq_lengths, params, drop_rate=0.0):
    """Mirror of Encoder.forward (eval mode).

    inputs      : (B, T, D) float32, D = 2 * embed_size
    seq_lengths : (B,) int
    params      : (w_ih_f, w_hh_f, b_ih_f, b_hh_f, w_ih_b, w_hh_b, b_ih_b, b_hh_b)
                  with PyTorch nn.LSTM layouts ((4H, D), (4H, H), (4H,), (4H,)).
    returns     : (B, T, 2H) float32
    """
    del drop_rate  # eval-mode dropout == identity
    B, T, D = inputs.shape
    w_ih_f, w_hh_f, b_ih_f, b_hh_f, w_ih_b, w_hh_b, b_ih_b, b_hh_b = params
    H = w_hh_f.shape[1]

    # Reorder PyTorch gate blocks (i, f, g, o) -> (i, f, o, g) so the sigmoid
    # gates are contiguous, and interleave the two directions per gate.
    # Final column layout: [i_f, i_b, f_f, f_b, o_f, o_b, g_f, g_b], each H.
    perm = jnp.array([0, 1, 3, 2])

    def gates_T(w):          # (4H, X) i,f,g,o -> (X, 4, H) in order i,f,o,g
        return jnp.asarray(w, jnp.float32).T.reshape(-1, 4, H)[:, perm, :]

    def gates_vec(b):        # (4H,) i,f,g,o -> (4, H) in order i,f,o,g
        return jnp.asarray(b, jnp.float32).reshape(4, H)[perm]

    # Block input-projection weight: rows 0:D act on x[t] (forward gates),
    # rows D:2D act on x[T-1-t] (backward gates); zeros elsewhere.
    wih_blk = jnp.zeros((2 * D, 4, 2, H), jnp.float32)
    wih_blk = wih_blk.at[:D, :, 0, :].set(gates_T(w_ih_f))
    wih_blk = wih_blk.at[D:, :, 1, :].set(gates_T(w_ih_b))
    wih_blk = wih_blk.reshape(2 * D, 8 * H)

    # Block-diagonal recurrent weight: h = [hf | hb] -> all 8H gate lanes.
    whh_blk = jnp.zeros((2 * H, 4, 2, H), jnp.float32)
    whh_blk = whh_blk.at[:H, :, 0, :].set(gates_T(w_hh_f))
    whh_blk = whh_blk.at[H:, :, 1, :].set(gates_T(w_hh_b))
    whh_blk = whh_blk.reshape(2 * H, 8 * H)

    # Combined (b_ih + b_hh) bias, same gate/direction layout.
    b_all = jnp.zeros((4, 2, H), jnp.float32)
    b_all = b_all.at[:, 0, :].set(gates_vec(b_ih_f + b_hh_f))
    b_all = b_all.at[:, 1, :].set(gates_vec(b_ih_b + b_hh_b))
    b_all = b_all.reshape(1, 8 * H)

    # Pre-blended input (wrapper-side layout plumbing, free in XLA):
    # row t*B + b holds [x[b, t, :] | x[b, T-1-t, :]].
    x_tbd = jnp.transpose(inputs, (1, 0, 2)).astype(jnp.float32)      # (T, B, D)
    x_pair = jnp.concatenate([x_tbd, x_tbd[::-1]], axis=-1)           # (T, B, 2D)
    x_pair = x_pair.reshape(T * B, 2 * D)
    lens = seq_lengths.astype(jnp.int32).reshape(B, 1)

    vmem = pl.BlockSpec(memory_space=pltpu.MemorySpace.VMEM)
    out_tb = pl.pallas_call(
        _bilstm_kernel,
        out_shape=jax.ShapeDtypeStruct((T, B, 2 * H), jnp.float32),
        in_specs=[vmem, vmem, vmem, vmem, vmem],
        out_specs=vmem,
        scratch_shapes=[pltpu.VMEM((T, B, 8 * H), jnp.float32)],
        # TODO(synk): for real BiDAF shapes (T~400-800, H~100, B~32) chunk the
        # gx scratch along T (gridded projection) so it fits v7x's 64 MiB VMEM.
        compiler_params=pltpu.CompilerParams(
            vmem_limit_bytes=32 * 1024 * 1024),
    )(x_pair, lens, wih_blk, whh_blk, b_all)

    # Forward half is stored time-ordered; backward half was stored at step
    # s = T-1-t, so flip it back along T in the wrapper (tiny XLA reverse).
    out_f = out_tb[:, :, :H]
    out_b = out_tb[::-1, :, H:]
    out = jnp.concatenate([out_f, out_b], axis=-1)    # (T, B, 2H)
    return jnp.transpose(out, (1, 0, 2))              # (B, T, 2H)


def _reference(inputs, seq_lengths, params):
    """Pure-JAX mirror of the PyTorch Encoder forward (eval mode)."""
    w_ih_f, w_hh_f, b_ih_f, b_hh_f, w_ih_b, w_hh_b, b_ih_b, b_hh_b = params
    B, T, D = inputs.shape
    H = w_hh_f.shape[1]

    mask = (jnp.arange(T)[None, :] < seq_lengths[:, None])      # (B, T) bool

    def run_direction(w_ih, w_hh, b_ih, b_hh, reverse):
        def step(carry, xm):
            h, c = carry
            xt, valid = xm                                      # (B, D), (B, 1)
            g = (jnp.dot(xt, w_ih.T, precision=PREC) + b_ih
                 + jnp.dot(h, w_hh.T, precision=PREC) + b_hh)
            i = jax.nn.sigmoid(g[:, 0 * H:1 * H])
            f = jax.nn.sigmoid(g[:, 1 * H:2 * H])
            gg = jnp.tanh(g[:, 2 * H:3 * H])
            o = jax.nn.sigmoid(g[:, 3 * H:4 * H])
            c_new = f * c + i * gg
            h_new = o * jnp.tanh(c_new)
            h = jnp.where(valid, h_new, h)
            c = jnp.where(valid, c_new, c)
            out = jnp.where(valid, h_new, 0.0)
            return (h, c), out

        xs = jnp.transpose(inputs, (1, 0, 2))                   # (T, B, D)
        ms = jnp.transpose(mask)[:, :, None]                    # (T, B, 1)
        if reverse:
            xs, ms = xs[::-1], ms[::-1]
        h0 = jnp.zeros((B, H), jnp.float32)
        _, outs = jax.lax.scan(step, (h0, h0), (xs, ms))
        if reverse:
            outs = outs[::-1]
        return jnp.transpose(outs, (1, 0, 2))                   # (B, T, H)

    out_f = run_direction(w_ih_f, w_hh_f, b_ih_f, b_hh_f, False)
    out_b = run_direction(w_ih_b, w_hh_b, b_ih_b, b_hh_b, True)
    return jnp.concatenate([out_f, out_b], axis=-1)


if __name__ == "__main__":
    embed_size = 16
    hidden = 16
    B, T = 2, 16
    D = 2 * embed_size            # LSTM input size = 2 * embed_size = 32

    key = jax.random.PRNGKey(0)
    ks = jax.random.split(key, 9)

    inputs = jax.random.normal(ks[0], (B, T, D), dtype=jnp.float32)
    seq_lengths = jnp.array([T, T - 5], dtype=jnp.int32)        # padded batch

    scale = 0.1
    w_ih_f = jax.random.normal(ks[1], (4 * hidden, D), jnp.float32) * scale
    w_hh_f = jax.random.normal(ks[2], (4 * hidden, hidden), jnp.float32) * scale
    b_ih_f = jax.random.normal(ks[3], (4 * hidden,), jnp.float32) * scale
    b_hh_f = jax.random.normal(ks[4], (4 * hidden,), jnp.float32) * scale
    w_ih_b = jax.random.normal(ks[5], (4 * hidden, D), jnp.float32) * scale
    w_hh_b = jax.random.normal(ks[6], (4 * hidden, hidden), jnp.float32) * scale
    b_ih_b = jax.random.normal(ks[7], (4 * hidden,), jnp.float32) * scale
    b_hh_b = jax.random.normal(ks[8], (4 * hidden,), jnp.float32) * scale
    params = (w_ih_f, w_hh_f, b_ih_f, b_hh_f,
              w_ih_b, w_hh_b, b_ih_b, b_hh_b)

    out = encoder_forward(inputs, seq_lengths, params, drop_rate=0.2)
    out = jax.block_until_ready(out)

    ref = _reference(inputs, seq_lengths, params)
    assert out.shape == (B, T, 2 * hidden)
    # Tolerance covers any residual MXU precision-path difference between the
    # Pallas and XLA lowerings while still catching semantic bugs (O(0.1)).
    assert jnp.allclose(out, ref, atol=5e-3, rtol=5e-3), "mismatch vs reference"

    print("KERNEL_OK")
</pallas_src>

<mosaic_0001>
module attributes {stable_mosaic.version = 11 : i64} {
  func.func @_bilstm_kernel(%arg0: memref<32x64xf32, #tpu.memory_space<vmem>>, %arg1: memref<2x1xi32, #tpu.memory_space<vmem>>, %arg2: memref<64x128xf32, #tpu.memory_space<vmem>>, %arg3: memref<32x128xf32, #tpu.memory_space<vmem>>, %arg4: memref<1x128xf32, #tpu.memory_space<vmem>>, %arg5: memref<16x2x32xf32, #tpu.memory_space<vmem>>, %arg6: memref<16x2x128xf32, #tpu.memory_space<vmem>>) attributes {dimension_semantics = [], scalar_prefetch = 0 : i64, scratch_operands = 1 : i64, tpu.core_type = #tpu.core_type<tc>} {
    %c0 = arith.constant 0 : index
    %c0_0 = arith.constant 0 : index
    %0 = vector.load %arg0[%c0, %c0_0] : memref<32x64xf32, #tpu.memory_space<vmem>>, vector<32x64xf32>
    %c0_1 = arith.constant 0 : index
    %c0_2 = arith.constant 0 : index
    %1 = vector.load %arg2[%c0_1, %c0_2] : memref<64x128xf32, #tpu.memory_space<vmem>>, vector<64x128xf32>
    %cst = arith.constant dense<0.000000e+00> : vector<32x128xf32>
    %2 = tpu.matmul %0, %1, %cst {dimension_numbers = #tpu.dot_dimension_numbers<[1], [0], [0], [1], [0, 0, 1, 1], [], []>} : vector<32x64xf32>, vector<64x128xf32>, vector<32x128xf32> -> vector<32x128xf32>
    %c0_3 = arith.constant 0 : index
    %c0_4 = arith.constant 0 : index
    %3 = vector.load %arg4[%c0_3, %c0_4] : memref<1x128xf32, #tpu.memory_space<vmem>>, vector<1x128xf32>
    %4 = vector.broadcast %3 : vector<1x128xf32> to vector<32x128xf32>
    %5 = arith.addf %2, %4 : vector<32x128xf32>
    %6 = vector.shape_cast %5 : vector<32x128xf32> to vector<16x2x128xf32>
    %c0_5 = arith.constant 0 : index
    %c0_6 = arith.constant 0 : index
    %c0_7 = arith.constant 0 : index
    %7 = vector.load %arg6[%c0_5, %c0_6, %c0_7] : memref<16x2x128xf32, #tpu.memory_space<vmem>>, vector<16x2x128xf32>
    tpu.vector_store %arg6[%c0_5, %c0_6, %c0_7], %6 {strides = array<i32>} : memref<16x2x128xf32, #tpu.memory_space<vmem>>, vector<16x2x128xf32>,
    %c0_8 = arith.constant 0 : index
    %c0_9 = arith.constant 0 : index
    %8 = vector.load %arg3[%c0_8, %c0_9] : memref<32x128xf32, #tpu.memory_space<vmem>>, vector<32x128xf32>
    %c0_10 = arith.constant 0 : index
    %c0_11 = arith.constant 0 : index
    %9 = vector.load %arg1[%c0_10, %c0_11] : memref<2x1xi32, #tpu.memory_space<vmem>>, vector<2x1xi32>
    %10 = tpu.iota {dimensions = array<i32: 1>} : vector<2x32xi32>
    %c16_i32 = arith.constant 16 : i32
    %11 = vector.broadcast %c16_i32 : i32 to vector<2x32xi32>
    %12 = arith.cmpi slt, %10, %11 : vector<2x32xi32>
    %cst_12 = arith.constant 0.000000e+00 : f32
    %13 = vector.broadcast %cst_12 : f32 to vector<2x32xf32>
    %c0_i32 = arith.constant 0 : i32
    %c15_i32 = arith.constant 15 : i32
    %14 = arith.subi %c15_i32, %c0_i32 : i32
    %15 = arith.index_cast %c0_i32 : i32 to index
    %c0_13 = arith.constant 0 : index
    %c0_14 = arith.constant 0 : index
    %16 = vector.load %arg6[%15, %c0_13, %c0_14] : memref<16x2x128xf32, #tpu.memory_space<vmem>>, vector<1x2x128xf32>
    %17 = vector.shape_cast %16 : vector<1x2x128xf32> to vector<2x128xf32>
    %cst_15 = arith.constant dense<0.000000e+00> : vector<2x128xf32>
    %18 = tpu.matmul %13, %8, %cst_15 {dimension_numbers = #tpu.dot_dimension_numbers<[1], [0], [0], [1], [0, 0, 1, 1], [], []>} : vector<2x32xf32>, vector<32x128xf32>, vector<2x128xf32> -> vector<2x128xf32>
    %19 = arith.addf %17, %18 : vector<2x128xf32>
    %20 = vector.extract_strided_slice %19 {offsets = [0, 0], sizes = [2, 96], strides = [1, 1]} : vector<2x128xf32> to vector<2x96xf32>
    %21 = arith.negf %20 : vector<2x96xf32>
    %22 = math.exp %21 : vector<2x96xf32>
    %cst_16 = arith.constant 1.000000e+00 : f32
    %23 = vector.broadcast %cst_16 : f32 to vector<2x96xf32>
    %24 = arith.addf %23, %22 : vector<2x96xf32>
    %25 = arith.divf %23, %24 : vector<2x96xf32>
    %26 = vector.extract_strided_slice %25 {offsets = [0, 0], sizes = [2, 32], strides = [1, 1]} : vector<2x96xf32> to vector<2x32xf32>
    %27 = vector.extract_strided_slice %25 {offsets = [0, 32], sizes = [2, 32], strides = [1, 1]} : vector<2x96xf32> to vector<2x32xf32>
    %28 = vector.extract_strided_slice %25 {offsets = [0, 64], sizes = [2, 32], strides = [1, 1]} : vector<2x96xf32> to vector<2x32xf32>
    %29 = vector.extract_strided_slice %19 {offsets = [0, 96], sizes = [2, 32], strides = [1, 1]} : vector<2x128xf32> to vector<2x32xf32>
    %30 = math.tanh %29 : vector<2x32xf32>
    %31 = arith.mulf %27, %13 : vector<2x32xf32>
    %32 = arith.mulf %26, %30 : vector<2x32xf32>
    %33 = arith.addf %31, %32 : vector<2x32xf32>
    %34 = math.tanh %33 : vector<2x32xf32>
    %35 = arith.mulf %28, %34 : vector<2x32xf32>
    %36 = vector.broadcast %c0_i32 : i32 to vector<2x32xi32>
    %37 = vector.broadcast %14 : i32 to vector<2x32xi32>
    %38 = arith.select %12, %36, %37 : vector<2x32xi1>, vector<2x32xi32>
    %39 = vector.broadcast %9 : vector<2x1xi32> to vector<2x32xi32>
    %40 = arith.cmpi sgt, %39, %38 : vector<2x32xi32>
    %cst_17 = arith.constant 0.000000e+00 : f32
    %41 = vector.broadcast %cst_17 : f32 to vector<2x32xf32>
    %42 = arith.select %40, %35, %41 : vector<2x32xi1>, vector<2x32xf32>
    %43 = arith.index_cast %c0_i32 : i32 to index
    %c0_18 = arith.constant 0 : index
    %c0_19 = arith.constant 0 : index
    %44 = vector.load %arg5[%43, %c0_18, %c0_19] : memref<16x2x32xf32, #tpu.memory_space<vmem>>, vector<1x2x32xf32>
    %45 = vector.shape_cast %44 : vector<1x2x32xf32> to vector<2x32xf32>
    %46 = vector.shape_cast %42 : vector<2x32xf32> to vector<1x2x32xf32>
    tpu.vector_store %arg5[%43, %c0_18, %c0_19], %46 {strides = array<i32>} : memref<16x2x32xf32, #tpu.memory_space<vmem>>, vector<1x2x32xf32>,
    %47 = arith.select %40, %35, %13 : vector<2x32xi1>, vector<2x32xf32>
    %48 = arith.select %40, %33, %13 : vector<2x32xi1>, vector<2x32xf32>
    %c1_i32 = arith.constant 1 : i32
    %c15_i32_20 = arith.constant 15 : i32
    %49 = arith.subi %c15_i32_20, %c1_i32 : i32
    %50 = arith.index_cast %c1_i32 : i32 to index
    %c0_21 = arith.constant 0 : index
    %c0_22 = arith.constant 0 : index
    %51 = vector.load %arg6[%50, %c0_21, %c0_22] : memref<16x2x128xf32, #tpu.memory_space<vmem>>, vector<1x2x128xf32>
    %52 = vector.shape_cast %51 : vector<1x2x128xf32> to vector<2x128xf32>
    %cst_23 = arith.constant dense<0.000000e+00> : vector<2x128xf32>
    %53 = tpu.matmul %47, %8, %cst_23 {dimension_numbers = #tpu.dot_dimension_numbers<[1], [0], [0], [1], [0, 0, 1, 1], [], []>} : vector<2x32xf32>, vector<32x128xf32>, vector<2x128xf32> -> vector<2x128xf32>
    %54 = arith.addf %52, %53 : vector<2x128xf32>
    %55 = vector.extract_strided_slice %54 {offsets = [0, 0], sizes = [2, 96], strides = [1, 1]} : vector<2x128xf32> to vector<2x96xf32>
    %56 = arith.negf %55 : vector<2x96xf32>
    %57 = math.exp %56 : vector<2x96xf32>
    %cst_24 = arith.constant 1.000000e+00 : f32
    %58 = vector.broadcast %cst_24 : f32 to vector<2x96xf32>
    %59 = arith.addf %58, %57 : vector<2x96xf32>
    %60 = arith.divf %58, %59 : vector<2x96xf32>
    %61 = vector.extract_strided_slice %60 {offsets = [0, 0], sizes = [2, 32], strides = [1, 1]} : vector<2x96xf32> to vector<2x32xf32>
    %62 = vector.extract_strided_slice %60 {offsets = [0, 32], sizes = [2, 32], strides = [1, 1]} : vector<2x96xf32> to vector<2x32xf32>
    %63 = vector.extract_strided_slice %60 {offsets = [0, 64], sizes = [2, 32], strides = [1, 1]} : vector<2x96xf32> to vector<2x32xf32>
    %64 = vector.extract_strided_slice %54 {offsets = [0, 96], sizes = [2, 32], strides = [1, 1]} : vector<2x128xf32> to vector<2x32xf32>
    %65 = math.tanh %64 : vector<2x32xf32>
    %66 = arith.mulf %62, %48 : vector<2x32xf32>
    %67 = arith.mulf %61, %65 : vector<2x32xf32>
    %68 = arith.addf %66, %67 : vector<2x32xf32>
    %69 = math.tanh %68 : vector<2x32xf32>
    %70 = arith.mulf %63, %69 : vector<2x32xf32>
    %71 = vector.broadcast %c1_i32 : i32 to vector<2x32xi32>
    %72 = vector.broadcast %49 : i32 to vector<2x32xi32>
    %73 = arith.select %12, %71, %72 : vector<2x32xi1>, vector<2x32xi32>
    %74 = vector.broadcast %9 : vector<2x1xi32> to vector<2x32xi32>
    %75 = arith.cmpi sgt, %74, %73 : vector<2x32xi32>
    %cst_25 = arith.constant 0.000000e+00 : f32
    %76 = vector.broadcast %cst_25 : f32 to vector<2x32xf32>
    %77 = arith.select %75, %70, %76 : vector<2x32xi1>, vector<2x32xf32>
    %78 = arith.index_cast %c1_i32 : i32 to index
    %c0_26 = arith.constant 0 : index
    %c0_27 = arith.constant 0 : index
    %79 = vector.load %arg5[%78, %c0_26, %c0_27] : memref<16x2x32xf32, #tpu.memory_space<vmem>>, vector<1x2x32xf32>
    %80 = vector.shape_cast %79 : vector<1x2x32xf32> to vector<2x32xf32>
    %81 = vector.shape_cast %77 : vector<2x32xf32> to vector<1x2x32xf32>
    tpu.vector_store %arg5[%78, %c0_26, %c0_27], %81 {strides = array<i32>} : memref<16x2x32xf32, #tpu.memory_space<vmem>>, vector<1x2x32xf32>,
    %82 = arith.select %75, %70, %47 : vector<2x32xi1>, vector<2x32xf32>
    %83 = arith.select %75, %68, %48 : vector<2x32xi1>, vector<2x32xf32>
    %c2_i32 = arith.constant 2 : i32
    %c15_i32_28 = arith.constant 15 : i32
    %84 = arith.subi %c15_i32_28, %c2_i32 : i32
    %85 = arith.index_cast %c2_i32 : i32 to index
    %c0_29 = arith.constant 0 : index
    %c0_30 = arith.constant 0 : index
    %86 = vector.load %arg6[%85, %c0_29, %c0_30] : memref<16x2x128xf32, #tpu.memory_space<vmem>>, vector<1x2x128xf32>
    %87 = vector.shape_cast %86 : vector<1x2x128xf32> to vector<2x128xf32>
    %cst_31 = arith.constant dense<0.000000e+00> : vector<2x128xf32>
    %88 = tpu.matmul %82, %8, %cst_31 {dimension_numbers = #tpu.dot_dimension_numbers<[1], [0], [0], [1], [0, 0, 1, 1], [], []>} : vector<2x32xf32>, vector<32x128xf32>, vector<2x128xf32> -> vector<2x128xf32>
    %89 = arith.addf %87, %88 : vector<2x128xf32>
    %90 = vector.extract_strided_slice %89 {offsets = [0, 0], sizes = [2, 96], strides = [1, 1]} : vector<2x128xf32> to vector<2x96xf32>
    %91 = arith.negf %90 : vector<2x96xf32>
    %92 = math.exp %91 : vector<2x96xf32>
    %cst_32 = arith.constant 1.000000e+00 : f32
    %93 = vector.broadcast %cst_32 : f32 to vector<2x96xf32>
    %94 = arith.addf %93, %92 : vector<2x96xf32>
    %95 = arith.divf %93, %94 : vector<2x96xf32>
    %96 = vector.extract_strided_slice %95 {offsets = [0, 0], sizes = [2, 32], strides = [1, 1]} : vector<2x96xf32> to vector<2x32xf32>
    %97 = vector.extract_strided_slice %95 {offsets = [0, 32], sizes = [2, 32], strides = [1, 1]} : vector<2x96xf32> to vector<2x32xf32>
    %98 = vector.extract_strided_slice %95 {offsets = [0, 64], sizes = [2, 32], strides = [1, 1]} : vector<2x96xf32> to vector<2x32xf32>
    %99 = vector.extract_strided_slice %89 {offsets = [0, 96], sizes = [2, 32], strides = [1, 1]} : vector<2x128xf32> to vector<2x32xf32>
    %100 = math.tanh %99 : vector<2x32xf32>
    %101 = arith.mulf %97, %83 : vector<2x32xf32>
    %102 = arith.mulf %96, %100 : vector<2x32xf32>
    %103 = arith.addf %101, %102 : vector<2x32xf32>
    %104 = math.tanh %103 : vector<2x32xf32>
    %105 = arith.mulf %98, %104 : vector<2x32xf32>
    %106 = vector.broadcast %c2_i32 : i32 to vector<2x32xi32>
    %107 = vector.broadcast %84 : i32 to vector<2x32xi32>
    %108 = arith.select %12, %106, %107 : vector<2x32xi1>, vector<2x32xi32>
    %109 = vector.broadcast %9 : vector<2x1xi32> to vector<2x32xi32>
    %110 = arith.cmpi sgt, %109, %108 : vector<2x32xi32>
    %cst_33 = arith.constant 0.000000e+00 : f32
    %111 = vector.broadcast %cst_33 : f32 to vector<2x32xf32>
    %112 = arith.select %110, %105, %111 : vector<2x32xi1>, vector<2x32xf32>
    %113 = arith.index_cast %c2_i32 : i32 to index
    %c0_34 = arith.constant 0 : index
    %c0_35 = arith.constant 0 : index
    %114 = vector.load %arg5[%113, %c0_34, %c0_35] : memref<16x2x32xf32, #tpu.memory_space<vmem>>, vector<1x2x32xf32>
    %115 = vector.shape_cast %114 : vector<1x2x32xf32> to vector<2x32xf32>
    %116 = vector.shape_cast %112 : vector<2x32xf32> to vector<1x2x32xf32>
    tpu.vector_store %arg5[%113, %c0_34, %c0_35], %116 {strides = array<i32>} : memref<16x2x32xf32, #tpu.memory_space<vmem>>, vector<1x2x32xf32>,
    %117 = arith.select %110, %105, %82 : vector<2x32xi1>, vector<2x32xf32>
    %118 = arith.select %110, %103, %83 : vector<2x32xi1>, vector<2x32xf32>
    %c3_i32 = arith.constant 3 : i32
    %c15_i32_36 = arith.constant 15 : i32
    %119 = arith.subi %c15_i32_36, %c3_i32 : i32
    %120 = arith.index_cast %c3_i32 : i32 to index
    %c0_37 = arith.constant 0 : index
    %c0_38 = arith.constant 0 : index
    %121 = vector.load %arg6[%120, %c0_37, %c0_38] : memref<16x2x128xf32, #tpu.memory_space<vmem>>, vector<1x2x128xf32>
    %122 = vector.shape_cast %121 : vector<1x2x128xf32> to vector<2x128xf32>
    %cst_39 = arith.constant dense<0.000000e+00> : vector<2x128xf32>
    %123 = tpu.matmul %117, %8, %cst_39 {dimension_numbers = #tpu.dot_dimension_numbers<[1], [0], [0], [1], [0, 0, 1, 1], [], []>} : vector<2x32xf32>, vector<32x128xf32>, vector<2x128xf32> -> vector<2x128xf32>
    %124 = arith.addf %122, %123 : vector<2x128xf32>
    %125 = vector.extract_strided_slice %124 {offsets = [0, 0], sizes = [2, 96], strides = [1, 1]} : vector<2x128xf32> to vector<2x96xf32>
    %126 = arith.negf %125 : vector<2x96xf32>
    %127 = math.exp %126 : vector<2x96xf32>
    %cst_40 = arith.constant 1.000000e+00 : f32
    %128 = vector.broadcast %cst_40 : f32 to vector<2x96xf32>
    %129 = arith.addf %128, %127 : vector<2x96xf32>
    %130 = arith.divf %128, %129 : vector<2x96xf32>
    %131 = vector.extract_strided_slice %130 {offsets = [0, 0], sizes = [2, 32], strides = [1, 1]} : vector<2x96xf32> to vector<2x32xf32>
    %132 = vector.extract_strided_slice %130 {offsets = [0, 32], sizes = [2, 32], strides = [1, 1]} : vector<2x96xf32> to vector<2x32xf32>
    %133 = vector.extract_strided_slice %130 {offsets = [0, 64], sizes = [2, 32], strides = [1, 1]} : vector<2x96xf32> to vector<2x32xf32>
    %134 = vector.extract_strided_slice %124 {offsets = [0, 96], sizes = [2, 32], strides = [1, 1]} : vector<2x128xf32> to vector<2x32xf32>
    %135 = math.tanh %134 : vector<2x32xf32>
    %136 = arith.mulf %132, %118 : vector<2x32xf32>
    %137 = arith.mulf %131, %135 : vector<2x32xf32>
    %138 = arith.addf %136, %137 : vector<2x32xf32>
    %139 = math.tanh %138 : vector<2x32xf32>
    %140 = arith.mulf %133, %139 : vector<2x32xf32>
    %141 = vector.broadcast %c3_i32 : i32 to vector<2x32xi32>
    %142 = vector.broadcast %119 : i32 to vector<2x32xi32>
    %143 = arith.select %12, %141, %142 : vector<2x32xi1>, vector<2x32xi32>
    %144 = vector.broadcast %9 : vector<2x1xi32> to vector<2x32xi32>
    %145 = arith.cmpi sgt, %144, %143 : vector<2x32xi32>
    %cst_41 = arith.constant 0.000000e+00 : f32
    %146 = vector.broadcast %cst_41 : f32 to vector<2x32xf32>
    %147 = arith.select %145, %140, %146 : vector<2x32xi1>, vector<2x32xf32>
    %148 = arith.index_cast %c3_i32 : i32 to index
    %c0_42 = arith.constant 0 : index
    %c0_43 = arith.constant 0 : index
    %149 = vector.load %arg5[%148, %c0_42, %c0_43] : memref<16x2x32xf32, #tpu.memory_space<vmem>>, vector<1x2x32xf32>
    %150 = vector.shape_cast %149 : vector<1x2x32xf32> to vector<2x32xf32>
    %151 = vector.shape_cast %147 : vector<2x32xf32> to vector<1x2x32xf32>
    tpu.vector_store %arg5[%148, %c0_42, %c0_43], %151 {strides = array<i32>} : memref<16x2x32xf32, #tpu.memory_space<vmem>>, vector<1x2x32xf32>,
    %152 = arith.select %145, %140, %117 : vector<2x32xi1>, vector<2x32xf32>
    %153 = arith.select %145, %138, %118 : vector<2x32xi1>, vector<2x32xf32>
    %c4_i32 = arith.constant 4 : i32
    %c15_i32_44 = arith.constant 15 : i32
    %154 = arith.subi %c15_i32_44, %c4_i32 : i32
    %155 = arith.index_cast %c4_i32 : i32 to index
    %c0_45 = arith.constant 0 : index
    %c0_46 = arith.constant 0 : index
    %156 = vector.load %arg6[%155, %c0_45, %c0_46] : memref<16x2x128xf32, #tpu.memory_space<vmem>>, vector<1x2x128xf32>
    %157 = vector.shape_cast %156 : vector<1x2x128xf32> to vector<2x128xf32>
    %cst_47 = arith.constant dense<0.000000e+00> : vector<2x128xf32>
    %158 = tpu.matmul %152, %8, %cst_47 {dimension_numbers = #tpu.dot_dimension_numbers<[1], [0], [0], [1], [0, 0, 1, 1], [], []>} : vector<2x32xf32>, vector<32x128xf32>, vector<2x128xf32> -> vector<2x128xf32>
    %159 = arith.addf %157, %158 : vector<2x128xf32>
    %160 = vector.extract_strided_slice %159 {offsets = [0, 0], sizes = [2, 96], strides = [1, 1]} : vector<2x128xf32> to vector<2x96xf32>
    %161 = arith.negf %160 : vector<2x96xf32>
    %162 = math.exp %161 : vector<2x96xf32>
    %cst_48 = arith.constant 1.000000e+00 : f32
    %163 = vector.broadcast %cst_48 : f32 to vector<2x96xf32>
    %164 = arith.addf %163, %162 : vector<2x96xf32>
    %165 = arith.divf %163, %164 : vector<2x96xf32>
    %166 = vector.extract_strided_slice %165 {offsets = [0, 0], sizes = [2, 32], strides = [1, 1]} : vector<2x96xf32> to vector<2x32xf32>
    %167 = vector.extract_strided_slice %165 {offsets = [0, 32], sizes = [2, 32], strides = [1, 1]} : vector<2x96xf32> to vector<2x32xf32>
    %168 = vector.extract_strided_slice %165 {offsets = [0, 64], sizes = [2, 32], strides = [1, 1]} : vector<2x96xf32> to vector<2x32xf32>
    %169 = vector.extract_strided_slice %159 {offsets = [0, 96], sizes = [2, 32], strides = [1, 1]} : vector<2x128xf32> to vector<2x32xf32>
    %170 = math.tanh %169 : vector<2x32xf32>
    %171 = arith.mulf %167, %153 : vector<2x32xf32>
    %172 = arith.mulf %166, %170 : vector<2x32xf32>
    %173 = arith.addf %171, %172 : vector<2x32xf32>
    %174 = math.tanh %173 : vector<2x32xf32>
    %175 = arith.mulf %168, %174 : vector<2x32xf32>
    %176 = vector.broadcast %c4_i32 : i32 to vector<2x32xi32>
    %177 = vector.broadcast %154 : i32 to vector<2x32xi32>
    %178 = arith.select %12, %176, %177 : vector<2x32xi1>, vector<2x32xi32>
    %179 = vector.broadcast %9 : vector<2x1xi32> to vector<2x32xi32>
    %180 = arith.cmpi sgt, %179, %178 : vector<2x32xi32>
    %cst_49 = arith.constant 0.000000e+00 : f32
    %181 = vector.broadcast %cst_49 : f32 to vector<2x32xf32>
    %182 = arith.select %180, %175, %181 : vector<2x32xi1>, vector<2x32xf32>
    %183 = arith.index_cast %c4_i32 : i32 to index
    %c0_50 = arith.constant 0 : index
    %c0_51 = arith.constant 0 : index
    %184 = vector.load %arg5[%183, %c0_50, %c0_51] : memref<16x2x32xf32, #tpu.memory_space<vmem>>, vector<1x2x32xf32>
    %185 = vector.shape_cast %184 : vector<1x2x32xf32> to vector<2x32xf32>
    %186 = vector.shape_cast %182 : vector<2x32xf32> to vector<1x2x32xf32>
    tpu.vector_store %arg5[%183, %c0_50, %c0_51], %186 {strides = array<i32>} : memref<16x2x32xf32, #tpu.memory_space<vmem>>, vector<1x2x32xf32>,
    %187 = arith.select %180, %175, %152 : vector<2x32xi1>, vector<2x32xf32>
    %188 = arith.select %180, %173, %153 : vector<2x32xi1>, vector<2x32xf32>
    %c5_i32 = arith.constant 5 : i32
    %c15_i32_52 = arith.constant 15 : i32
    %189 = arith.subi %c15_i32_52, %c5_i32 : i32
    %190 = arith.index_cast %c5_i32 : i32 to index
    %c0_53 = arith.constant 0 : index
    %c0_54 = arith.constant 0 : index
    %191 = vector.load %arg6[%190, %c0_53, %c0_54] : memref<16x2x128xf32, #tpu.memory_space<vmem>>, vector<1x2x128xf32>
    %192 = vector.shape_cast %191 : vector<1x2x128xf32> to vector<2x128xf32>
    %cst_55 = arith.constant dense<0.000000e+00> : vector<2x128xf32>
    %193 = tpu.matmul %187, %8, %cst_55 {dimension_numbers = #tpu.dot_dimension_numbers<[1], [0], [0], [1], [0, 0, 1, 1], [], []>} : vector<2x32xf32>, vector<32x128xf32>, vector<2x128xf32> -> vector<2x128xf32>
    %194 = arith.addf %192, %193 : vector<2x128xf32>
    %195 = vector.extract_strided_slice %194 {offsets = [0, 0], sizes = [2, 96], strides = [1, 1]} : vector<2x128xf32> to vector<2x96xf32>
    %196 = arith.negf %195 : vector<2x96xf32>
    %197 = math.exp %196 : vector<2x96xf32>
    %cst_56 = arith.constant 1.000000e+00 : f32
    %198 = vector.broadcast %cst_56 : f32 to vector<2x96xf32>
    %199 = arith.addf %198, %197 : vector<2x96xf32>
    %200 = arith.divf %198, %199 : vector<2x96xf32>
    %201 = vector.extract_strided_slice %200 {offsets = [0, 0], sizes = [2, 32], strides = [1, 1]} : vector<2x96xf32> to vector<2x32xf32>
    %202 = vector.extract_strided_slice %200 {offsets = [0, 32], sizes = [2, 32], strides = [1, 1]} : vector<2x96xf32> to vector<2x32xf32>
    %203 = vector.extract_strided_slice %200 {offsets = [0, 64], sizes = [2, 32], strides = [1, 1]} : vector<2x96xf32> to vector<2x32xf32>
    %204 = vector.extract_strided_slice %194 {offsets = [0, 96], sizes = [2, 32], strides = [1, 1]} : vector<2x128xf32> to vector<2x32xf32>
    %205 = math.tanh %204 : vector<2x32xf32>
    %206 = arith.mulf %202, %188 : vector<2x32xf32>
    %207 = arith.mulf %201, %205 : vector<2x32xf32>
    %208 = arith.addf %206, %207 : vector<2x32xf32>
    %209 = math.tanh %208 : vector<2x32xf32>
    %210 = arith.mulf %203, %209 : vector<2x32xf32>
    %211 = vector.broadcast %c5_i32 : i32 to vector<2x32xi32>
    %212 = vector.broadcast %189 : i32 to vector<2x32xi32>
    %213 = arith.select %12, %211, %212 : vector<2x32xi1>, vector<2x32xi32>
    %214 = vector.broadcast %9 : vector<2x1xi32> to vector<2x32xi32>
    %215 = arith.cmpi sgt, %214, %213 : vector<2x32xi32>
    %cst_57 = arith.constant 0.000000e+00 : f32
    %216 = vector.broadcast %cst_57 : f32 to vector<2x32xf32>
    %217 = arith.select %215, %210, %216 : vector<2x32xi1>, vector<2x32xf32>
    %218 = arith.index_cast %c5_i32 : i32 to index
    %c0_58 = arith.constant 0 : index
    %c0_59 = arith.constant 0 : index
    %219 = vector.load %arg5[%218, %c0_58, %c0_59] : memref<16x2x32xf32, #tpu.memory_space<vmem>>, vector<1x2x32xf32>
    %220 = vector.shape_cast %219 : vector<1x2x32xf32> to vector<2x32xf32>
    %221 = vector.shape_cast %217 : vector<2x32xf32> to vector<1x2x32xf32>
    tpu.vector_store %arg5[%218, %c0_58, %c0_59], %221 {strides = array<i32>} : memref<16x2x32xf32, #tpu.memory_space<vmem>>, vector<1x2x32xf32>,
    %222 = arith.select %215, %210, %187 : vector<2x32xi1>, vector<2x32xf32>
    %223 = arith.select %215, %208, %188 : vector<2x32xi1>, vector<2x32xf32>
    %c6_i32 = arith.constant 6 : i32
    %c15_i32_60 = arith.constant 15 : i32
    %224 = arith.subi %c15_i32_60, %c6_i32 : i32
    %225 = arith.index_cast %c6_i32 : i32 to index
    %c0_61 = arith.constant 0 : index
    %c0_62 = arith.constant 0 : index
    %226 = vector.load %arg6[%225, %c0_61, %c0_62] : memref<16x2x128xf32, #tpu.memory_space<vmem>>, vector<1x2x128xf32>
    %227 = vector.shape_cast %226 : vector<1x2x128xf32> to vector<2x128xf32>
    %cst_63 = arith.constant dense<0.000000e+00> : vector<2x128xf32>
    %228 = tpu.matmul %222, %8, %cst_63 {dimension_numbers = #tpu.dot_dimension_numbers<[1], [0], [0], [1], [0, 0, 1, 1], [], []>} : vector<2x32xf32>, vector<32x128xf32>, vector<2x128xf32> -> vector<2x128xf32>
    %229 = arith.addf %227, %228 : vector<2x128xf32>
    %230 = vector.extract_strided_slice %229 {offsets = [0, 0], sizes = [2, 96], strides = [1, 1]} : vector<2x128xf32> to vector<2x96xf32>
    %231 = arith.negf %230 : vector<2x96xf32>
    %232 = math.exp %231 : vector<2x96xf32>
    %cst_64 = arith.constant 1.000000e+00 : f32
    %233 = vector.broadcast %cst_64 : f32 to vector<2x96xf32>
    %234 = arith.addf %233, %232 : vector<2x96xf32>
    %235 = arith.divf %233, %234 : vector<2x96xf32>
    %236 = vector.extract_strided_slice %235 {offsets = [0, 0], sizes = [2, 32], strides = [1, 1]} : vector<2x96xf32> to vector<2x32xf32>
    %237 = vector.extract_strided_slice %235 {offsets = [0, 32], sizes = [2, 32], strides = [1, 1]} : vector<2x96xf32> to vector<2x32xf32>
    %238 = vector.extract_strided_slice %235 {offsets = [0, 64], sizes = [2, 32], strides = [1, 1]} : vector<2x96xf32> to vector<2x32xf32>
    %239 = vector.extract_strided_slice %229 {offsets = [0, 96], sizes = [2, 32], strides = [1, 1]} : vector<2x128xf32> to vector<2x32xf32>
    %240 = math.tanh %239 : vector<2x32xf32>
    %241 = arith.mulf %237, %223 : vector<2x32xf32>
    %242 = arith.mulf %236, %240 : vector<2x32xf32>
    %243 = arith.addf %241, %242 : vector<2x32xf32>
    %244 = math.tanh %243 : vector<2x32xf32>
    %245 = arith.mulf %238, %244 : vector<2x32xf32>
    %246 = vector.broadcast %c6_i32 : i32 to vector<2x32xi32>
    %247 = vector.broadcast %224 : i32 to vector<2x32xi32>
    %248 = arith.select %12, %246, %247 : vector<2x32xi1>, vector<2x32xi32>
    %249 = vector.broadcast %9 : vector<2x1xi32> to vector<2x32xi32>
    %250 = arith.cmpi sgt, %249, %248 : vector<2x32xi32>
    %cst_65 = arith.constant 0.000000e+00 : f32
    %251 = vector.broadcast %cst_65 : f32 to vector<2x32xf32>
    %252 = arith.select %250, %245, %251 : vector<2x32xi1>, vector<2x32xf32>
    %253 = arith.index_cast %c6_i32 : i32 to index
    %c0_66 = arith.constant 0 : index
    %c0_67 = arith.constant 0 : index
    %254 = vector.load %arg5[%253, %c0_66, %c0_67] : memref<16x2x32xf32, #tpu.memory_space<vmem>>, vector<1x2x32xf32>
    %255 = vector.shape_cast %254 : vector<1x2x32xf32> to vector<2x32xf32>
    %256 = vector.shape_cast %252 : vector<2x32xf32> to vector<1x2x32xf32>
    tpu.vector_store %arg5[%253, %c0_66, %c0_67], %256 {strides = array<i32>} : memref<16x2x32xf32, #tpu.memory_space<vmem>>, vector<1x2x32xf32>,
    %257 = arith.select %250, %245, %222 : vector<2x32xi1>, vector<2x32xf32>
    %258 = arith.select %250, %243, %223 : vector<2x32xi1>, vector<2x32xf32>
    %c7_i32 = arith.constant 7 : i32
    %c15_i32_68 = arith.constant 15 : i32
    %259 = arith.subi %c15_i32_68, %c7_i32 : i32
    %260 = arith.index_cast %c7_i32 : i32 to index
    %c0_69 = arith.constant 0 : index
    %c0_70 = arith.constant 0 : index
    %261 = vector.load %arg6[%260, %c0_69, %c0_70] : memref<16x2x128xf32, #tpu.memory_space<vmem>>, vector<1x2x128xf32>
    %262 = vector.shape_cast %261 : vector<1x2x128xf32> to vector<2x128xf32>
    %cst_71 = arith.constant dense<0.000000e+00> : vector<2x128xf32>
    %263 = tpu.matmul %257, %8, %cst_71 {dimension_numbers = #tpu.dot_dimension_numbers<[1], [0], [0], [1], [0, 0, 1, 1], [], []>} : vector<2x32xf32>, vector<32x128xf32>, vector<2x128xf32> -> vector<2x128xf32>
    %264 = arith.addf %262, %263 : vector<2x128xf32>
    %265 = vector.extract_strided_slice %264 {offsets = [0, 0], sizes = [2, 96], strides = [1, 1]} : vector<2x128xf32> to vector<2x96xf32>
    %266 = arith.negf %265 : vector<2x96xf32>
    %267 = math.exp %266 : vector<2x96xf32>
    %cst_72 = arith.constant 1.000000e+00 : f32
    %268 = vector.broadcast %cst_72 : f32 to vector<2x96xf32>
    %269 = arith.addf %268, %267 : vector<2x96xf32>
    %270 = arith.divf %268, %269 : vector<2x96xf32>
    %271 = vector.extract_strided_slice %270 {offsets = [0, 0], sizes = [2, 32], strides = [1, 1]} : vector<2x96xf32> to vector<2x32xf32>
    %272 = vector.extract_strided_slice %270 {offsets = [0, 32], sizes = [2, 32], strides = [1, 1]} : vector<2x96xf32> to vector<2x32xf32>
    %273 = vector.extract_strided_slice %270 {offsets = [0, 64], sizes = [2, 32], strides = [1, 1]} : vector<2x96xf32> to vector<2x32xf32>
    %274 = vector.extract_strided_slice %264 {offsets = [0, 96], sizes = [2, 32], strides = [1, 1]} : vector<2x128xf32> to vector<2x32xf32>
    %275 = math.tanh %274 : vector<2x32xf32>
    %276 = arith.mulf %272, %258 : vector<2x32xf32>
    %277 = arith.mulf %271, %275 : vector<2x32xf32>
    %278 = arith.addf %276, %277 : vector<2x32xf32>
    %279 = math.tanh %278 : vector<2x32xf32>
    %280 = arith.mulf %273, %279 : vector<2x32xf32>
    %281 = vector.broadcast %c7_i32 : i32 to vector<2x32xi32>
    %282 = vector.broadcast %259 : i32 to vector<2x32xi32>
    %283 = arith.select %12, %281, %282 : vector<2x32xi1>, vector<2x32xi32>
    %284 = vector.broadcast %9 : vector<2x1xi32> to vector<2x32xi32>
    %285 = arith.cmpi sgt, %284, %283 : vector<2x32xi32>
    %cst_73 = arith.constant 0.000000e+00 : f32
    %286 = vector.broadcast %cst_73 : f32 to vector<2x32xf32>
    %287 = arith.select %285, %280, %286 : vector<2x32xi1>, vector<2x32xf32>
    %288 = arith.index_cast %c7_i32 : i32 to index
    %c0_74 = arith.constant 0 : index
    %c0_75 = arith.constant 0 : index
    %289 = vector.load %arg5[%288, %c0_74, %c0_75] : memref<16x2x32xf32, #tpu.memory_space<vmem>>, vector<1x2x32xf32>
    %290 = vector.shape_cast %289 : vector<1x2x32xf32> to vector<2x32xf32>
    %291 = vector.shape_cast %287 : vector<2x32xf32> to vector<1x2x32xf32>
    tpu.vector_store %arg5[%288, %c0_74, %c0_75], %291 {strides = array<i32>} : memref<16x2x32xf32, #tpu.memory_space<vmem>>, vector<1x2x32xf32>,
    %292 = arith.select %285, %280, %257 : vector<2x32xi1>, vector<2x32xf32>
    %293 = arith.select %285, %278, %258 : vector<2x32xi1>, vector<2x32xf32>
    %c8_i32 = arith.constant 8 : i32
    %c15_i32_76 = arith.constant 15 : i32
    %294 = arith.subi %c15_i32_76, %c8_i32 : i32
    %295 = arith.index_cast %c8_i32 : i32 to index
    %c0_77 = arith.constant 0 : index
    %c0_78 = arith.constant 0 : index
    %296 = vector.load %arg6[%295, %c0_77, %c0_78] : memref<16x2x128xf32, #tpu.memory_space<vmem>>, vector<1x2x128xf32>
    %297 = vector.shape_cast %296 : vector<1x2x128xf32> to vector<2x128xf32>
    %cst_79 = arith.constant dense<0.000000e+00> : vector<2x128xf32>
    %298 = tpu.matmul %292, %8, %cst_79 {dimension_numbers = #tpu.dot_dimension_numbers<[1], [0], [0], [1], [0, 0, 1, 1], [], []>} : vector<2x32xf32>, vector<32x128xf32>, vector<2x128xf32> -> vector<2x128xf32>
    %299 = arith.addf %297, %298 : vector<2x128xf32>
    %300 = vector.extract_strided_slice %299 {offsets = [0, 0], sizes = [2, 96], strides = [1, 1]} : vector<2x128xf32> to vector<2x96xf32>
    %301 = arith.negf %300 : vector<2x96xf32>
    %302 = math.exp %301 : vector<2x96xf32>
    %cst_80 = arith.constant 1.000000e+00 : f32
    %303 = vector.broadcast %cst_80 : f32 to vector<2x96xf32>
    %304 = arith.addf %303, %302 : vector<2x96xf32>
    %305 = arith.divf %303, %304 : vector<2x96xf32>
    %306 = vector.extract_strided_slice %305 {offsets = [0, 0], sizes = [2, 32], strides = [1, 1]} : vector<2x96xf32> to vector<2x32xf32>
    %307 = vector.extract_strided_slice %305 {offsets = [0, 32], sizes = [2, 32], strides = [1, 1]} : vector<2x96xf32> to vector<2x32xf32>
    %308 = vector.extract_strided_slice %305 {offsets = [0, 64], sizes = [2, 32], strides = [1, 1]} : vector<2x96xf32> to vector<2x32xf32>
    %309 = vector.extract_strided_slice %299 {offsets = [0, 96], sizes = [2, 32], strides = [1, 1]} : vector<2x128xf32> to vector<2x32xf32>
    %310 = math.tanh %309 : vector<2x32xf32>
    %311 = arith.mulf %307, %293 : vector<2x32xf32>
    %312 = arith.mulf %306, %310 : vector<2x32xf32>
    %313 = arith.addf %311, %312 : vector<2x32xf32>
    %314 = math.tanh %313 : vector<2x32xf32>
    %315 = arith.mulf %308, %314 : vector<2x32xf32>
    %316 = vector.broadcast %c8_i32 : i32 to vector<2x32xi32>
    %317 = vector.broadcast %294 : i32 to vector<2x32xi32>
    %318 = arith.select %12, %316, %317 : vector<2x32xi1>, vector<2x32xi32>
    %319 = vector.broadcast %9 : vector<2x1xi32> to vector<2x32xi32>
    %320 = arith.cmpi sgt, %319, %318 : vector<2x32xi32>
    %cst_81 = arith.constant 0.000000e+00 : f32
    %321 = vector.broadcast %cst_81 : f32 to vector<2x32xf32>
    %322 = arith.select %320, %315, %321 : vector<2x32xi1>, vector<2x32xf32>
    %323 = arith.index_cast %c8_i32 : i32 to index
    %c0_82 = arith.constant 0 : index
    %c0_83 = arith.constant 0 : index
    %324 = vector.load %arg5[%323, %c0_82, %c0_83] : memref<16x2x32xf32, #tpu.memory_space<vmem>>, vector<1x2x32xf32>
    %325 = vector.shape_cast %324 : vector<1x2x32xf32> to vector<2x32xf32>
    %326 = vector.shape_cast %322 : vector<2x32xf32> to vector<1x2x32xf32>
    tpu.vector_store %arg5[%323, %c0_82, %c0_83], %326 {strides = array<i32>} : memref<16x2x32xf32, #tpu.memory_space<vmem>>, vector<1x2x32xf32>,
    %327 = arith.select %320, %315, %292 : vector<2x32xi1>, vector<2x32xf32>
    %328 = arith.select %320, %313, %293 : vector<2x32xi1>, vector<2x32xf32>
    %c9_i32 = arith.constant 9 : i32
    %c15_i32_84 = arith.constant 15 : i32
    %329 = arith.subi %c15_i32_84, %c9_i32 : i32
    %330 = arith.index_cast %c9_i32 : i32 to index
    %c0_85 = arith.constant 0 : index
    %c0_86 = arith.constant 0 : index
    %331 = vector.load %arg6[%330, %c0_85, %c0_86] : memref<16x2x128xf32, #tpu.memory_space<vmem>>, vector<1x2x128xf32>
    %332 = vector.shape_cast %331 : vector<1x2x128xf32> to vector<2x128xf32>
    %cst_87 = arith.constant dense<0.000000e+00> : vector<2x128xf32>
    %333 = tpu.matmul %327, %8, %cst_87 {dimension_numbers = #tpu.dot_dimension_numbers<[1], [0], [0], [1], [0, 0, 1, 1], [], []>} : vector<2x32xf32>, vector<32x128xf32>, vector<2x128xf32> -> vector<2x128xf32>
    %334 = arith.addf %332, %333 : vector<2x128xf32>
    %335 = vector.extract_strided_slice %334 {offsets = [0, 0], sizes = [2, 96], strides = [1, 1]} : vector<2x128xf32> to vector<2x96xf32>
    %336 = arith.negf %335 : vector<2x96xf32>
    %337 = math.exp %336 : vector<2x96xf32>
    %cst_88 = arith.constant 1.000000e+00 : f32
    %338 = vector.broadcast %cst_88 : f32 to vector<2x96xf32>
    %339 = arith.addf %338, %337 : vector<2x96xf32>
    %340 = arith.divf %338, %339 : vector<2x96xf32>
    %341 = vector.extract_strided_slice %340 {offsets = [0, 0], sizes = [2, 32], strides = [1, 1]} : vector<2x96xf32> to vector<2x32xf32>
    %342 = vector.extract_strided_slice %340 {offsets = [0, 32], sizes = [2, 32], strides = [1, 1]} : vector<2x96xf32> to vector<2x32xf32>
    %343 = vector.extract_strided_slice %340 {offsets = [0, 64], sizes = [2, 32], strides = [1, 1]} : vector<2x96xf32> to vector<2x32xf32>
    %344 = vector.extract_strided_slice %334 {offsets = [0, 96], sizes = [2, 32], strides = [1, 1]} : vector<2x128xf32> to vector<2x32xf32>
    %345 = math.tanh %344 : vector<2x32xf32>
    %346 = arith.mulf %342, %328 : vector<2x32xf32>
    %347 = arith.mulf %341, %345 : vector<2x32xf32>
    %348 = arith.addf %346, %347 : vector<2x32xf32>
    %349 = math.tanh %348 : vector<2x32xf32>
    %350 = arith.mulf %343, %349 : vector<2x32xf32>
    %351 = vector.broadcast %c9_i32 : i32 to vector<2x32xi32>
    %352 = vector.broadcast %329 : i32 to vector<2x32xi32>
    %353 = arith.select %12, %351, %352 : vector<2x32xi1>, vector<2x32xi32>
    %354 = vector.broadcast %9 : vector<2x1xi32> to vector<2x32xi32>
    %355 = arith.cmpi sgt, %354, %353 : vector<2x32xi32>
    %cst_89 = arith.constant 0.000000e+00 : f32
    %356 = vector.broadcast %cst_89 : f32 to vector<2x32xf32>
    %357 = arith.select %355, %350, %356 : vector<2x32xi1>, vector<2x32xf32>
    %358 = arith.index_cast %c9_i32 : i32 to index
    %c0_90 = arith.constant 0 : index
    %c0_91 = arith.constant 0 : index
    %359 = vector.load %arg5[%358, %c0_90, %c0_91] : memref<16x2x32xf32, #tpu.memory_space<vmem>>, vector<1x2x32xf32>
    %360 = vector.shape_cast %359 : vector<1x2x32xf32> to vector<2x32xf32>
    %361 = vector.shape_cast %357 : vector<2x32xf32> to vector<1x2x32xf32>
    tpu.vector_store %arg5[%358, %c0_90, %c0_91], %361 {strides = array<i32>} : memref<16x2x32xf32, #tpu.memory_space<vmem>>, vector<1x2x32xf32>,
    %362 = arith.select %355, %350, %327 : vector<2x32xi1>, vector<2x32xf32>
    %363 = arith.select %355, %348, %328 : vector<2x32xi1>, vector<2x32xf32>
    %c10_i32 = arith.constant 10 : i32
    %c15_i32_92 = arith.constant 15 : i32
    %364 = arith.subi %c15_i32_92, %c10_i32 : i32
    %365 = arith.index_cast %c10_i32 : i32 to index
    %c0_93 = arith.constant 0 : index
    %c0_94 = arith.constant 0 : index
    %366 = vector.load %arg6[%365, %c0_93, %c0_94] : memref<16x2x128xf32, #tpu.memory_space<vmem>>, vector<1x2x128xf32>
    %367 = vector.shape_cast %366 : vector<1x2x128xf32> to vector<2x128xf32>
    %cst_95 = arith.constant dense<0.000000e+00> : vector<2x128xf32>
    %368 = tpu.matmul %362, %8, %cst_95 {dimension_numbers = #tpu.dot_dimension_numbers<[1], [0], [0], [1], [0, 0, 1, 1], [], []>} : vector<2x32xf32>, vector<32x128xf32>, vector<2x128xf32> -> vector<2x128xf32>
    %369 = arith.addf %367, %368 : vector<2x128xf32>
    %370 = vector.extract_strided_slice %369 {offsets = [0, 0], sizes = [2, 96], strides = [1, 1]} : vector<2x128xf32> to vector<2x96xf32>
    %371 = arith.negf %370 : vector<2x96xf32>
    %372 = math.exp %371 : vector<2x96xf32>
    %cst_96 = arith.constant 1.000000e+00 : f32
    %373 = vector.broadcast %cst_96 : f32 to vector<2x96xf32>
    %374 = arith.addf %373, %372 : vector<2x96xf32>
    %375 = arith.divf %373, %374 : vector<2x96xf32>
    %376 = vector.extract_strided_slice %375 {offsets = [0, 0], sizes = [2, 32], strides = [1, 1]} : vector<2x96xf32> to vector<2x32xf32>
    %377 = vector.extract_strided_slice %375 {offsets = [0, 32], sizes = [2, 32], strides = [1, 1]} : vector<2x96xf32> to vector<2x32xf32>
    %378 = vector.extract_strided_slice %375 {offsets = [0, 64], sizes = [2, 32], strides = [1, 1]} : vector<2x96xf32> to vector<2x32xf32>
    %379 = vector.extract_strided_slice %369 {offsets = [0, 96], sizes = [2, 32], strides = [1, 1]} : vector<2x128xf32> to vector<2x32xf32>
    %380 = math.tanh %379 : vector<2x32xf32>
    %381 = arith.mulf %377, %363 : vector<2x32xf32>
    %382 = arith.mulf %376, %380 : vector<2x32xf32>
    %383 = arith.addf %381, %382 : vector<2x32xf32>
    %384 = math.tanh %383 : vector<2x32xf32>
    %385 = arith.mulf %378, %384 : vector<2x32xf32>
    %386 = vector.broadcast %c10_i32 : i32 to vector<2x32xi32>
    %387 = vector.broadcast %364 : i32 to vector<2x32xi32>
    %388 = arith.select %12, %386, %387 : vector<2x32xi1>, vector<2x32xi32>
    %389 = vector.broadcast %9 : vector<2x1xi32> to vector<2x32xi32>
    %390 = arith.cmpi sgt, %389, %388 : vector<2x32xi32>
    %cst_97 = arith.constant 0.000000e+00 : f32
    %391 = vector.broadcast %cst_97 : f32 to vector<2x32xf32>
    %392 = arith.select %390, %385, %391 : vector<2x32xi1>, vector<2x32xf32>
    %393 = arith.index_cast %c10_i32 : i32 to index
    %c0_98 = arith.constant 0 : index
    %c0_99 = arith.constant 0 : index
    %394 = vector.load %arg5[%393, %c0_98, %c0_99] : memref<16x2x32xf32, #tpu.memory_space<vmem>>, vector<1x2x32xf32>
    %395 = vector.shape_cast %394 : vector<1x2x32xf32> to vector<2x32xf32>
    %396 = vector.shape_cast %392 : vector<2x32xf32> to vector<1x2x32xf32>
    tpu.vector_store %arg5[%393, %c0_98, %c0_99], %396 {strides = array<i32>} : memref<16x2x32xf32, #tpu.memory_space<vmem>>, vector<1x2x32xf32>,
    %397 = arith.select %390, %385, %362 : vector<2x32xi1>, vector<2x32xf32>
    %398 = arith.select %390, %383, %363 : vector<2x32xi1>, vector<2x32xf32>
    %c11_i32 = arith.constant 11 : i32
    %c15_i32_100 = arith.constant 15 : i32
    %399 = arith.subi %c15_i32_100, %c11_i32 : i32
    %400 = arith.index_cast %c11_i32 : i32 to index
    %c0_101 = arith.constant 0 : index
    %c0_102 = arith.constant 0 : index
    %401 = vector.load %arg6[%400, %c0_101, %c0_102] : memref<16x2x128xf32, #tpu.memory_space<vmem>>, vector<1x2x128xf32>
    %402 = vector.shape_cast %401 : vector<1x2x128xf32> to vector<2x128xf32>
    %cst_103 = arith.constant dense<0.000000e+00> : vector<2x128xf32>
    %403 = tpu.matmul %397, %8, %cst_103 {dimension_numbers = #tpu.dot_dimension_numbers<[1], [0], [0], [1], [0, 0, 1, 1], [], []>} : vector<2x32xf32>, vector<32x128xf32>, vector<2x128xf32> -> vector<2x128xf32>
    %404 = arith.addf %402, %403 : vector<2x128xf32>
    %405 = vector.extract_strided_slice %404 {offsets = [0, 0], sizes = [2, 96], strides = [1, 1]} : vector<2x128xf32> to vector<2x96xf32>
    %406 = arith.negf %405 : vector<2x96xf32>
    %407 = math.exp %406 : vector<2x96xf32>
    %cst_104 = arith.constant 1.000000e+00 : f32
    %408 = vector.broadcast %cst_104 : f32 to vector<2x96xf32>
    %409 = arith.addf %408, %407 : vector<2x96xf32>
    %410 = arith.divf %408, %409 : vector<2x96xf32>
    %411 = vector.extract_strided_slice %410 {offsets = [0, 0], sizes = [2, 32], strides = [1, 1]} : vector<2x96xf32> to vector<2x32xf32>
    %412 = vector.extract_strided_slice %410 {offsets = [0, 32], sizes = [2, 32], strides = [1, 1]} : vector<2x96xf32> to vector<2x32xf32>
    %413 = vector.extract_strided_slice %410 {offsets = [0, 64], sizes = [2, 32], strides = [1, 1]} : vector<2x96xf32> to vector<2x32xf32>
    %414 = vector.extract_strided_slice %404 {offsets = [0, 96], sizes = [2, 32], strides = [1, 1]} : vector<2x128xf32> to vector<2x32xf32>
    %415 = math.tanh %414 : vector<2x32xf32>
    %416 = arith.mulf %412, %398 : vector<2x32xf32>
    %417 = arith.mulf %411, %415 : vector<2x32xf32>
    %418 = arith.addf %416, %417 : vector<2x32xf32>
    %419 = math.tanh %418 : vector<2x32xf32>
    %420 = arith.mulf %413, %419 : vector<2x32xf32>
    %421 = vector.broadcast %c11_i32 : i32 to vector<2x32xi32>
    %422 = vector.broadcast %399 : i32 to vector<2x32xi32>
    %423 = arith.select %12, %421, %422 : vector<2x32xi1>, vector<2x32xi32>
    %424 = vector.broadcast %9 : vector<2x1xi32> to vector<2x32xi32>
    %425 = arith.cmpi sgt, %424, %423 : vector<2x32xi32>
    %cst_105 = arith.constant 0.000000e+00 : f32
    %426 = vector.broadcast %cst_105 : f32 to vector<2x32xf32>
    %427 = arith.select %425, %420, %426 : vector<2x32xi1>, vector<2x32xf32>
    %428 = arith.index_cast %c11_i32 : i32 to index
    %c0_106 = arith.constant 0 : index
    %c0_107 = arith.constant 0 : index
    %429 = vector.load %arg5[%428, %c0_106, %c0_107] : memref<16x2x32xf32, #tpu.memory_space<vmem>>, vector<1x2x32xf32>
    %430 = vector.shape_cast %429 : vector<1x2x32xf32> to vector<2x32xf32>
    %431 = vector.shape_cast %427 : vector<2x32xf32> to vector<1x2x32xf32>
    tpu.vector_store %arg5[%428, %c0_106, %c0_107], %431 {strides = array<i32>} : memref<16x2x32xf32, #tpu.memory_space<vmem>>, vector<1x2x32xf32>,
    %432 = arith.select %425, %420, %397 : vector<2x32xi1>, vector<2x32xf32>
    %433 = arith.select %425, %418, %398 : vector<2x32xi1>, vector<2x32xf32>
    %c12_i32 = arith.constant 12 : i32
    %c15_i32_108 = arith.constant 15 : i32
    %434 = arith.subi %c15_i32_108, %c12_i32 : i32
    %435 = arith.index_cast %c12_i32 : i32 to index
    %c0_109 = arith.constant 0 : index
    %c0_110 = arith.constant 0 : index
    %436 = vector.load %arg6[%435, %c0_109, %c0_110] : memref<16x2x128xf32, #tpu.memory_space<vmem>>, vector<1x2x128xf32>
    %437 = vector.shape_cast %436 : vector<1x2x128xf32> to vector<2x128xf32>
    %cst_111 = arith.constant dense<0.000000e+00> : vector<2x128xf32>
    %438 = tpu.matmul %432, %8, %cst_111 {dimension_numbers = #tpu.dot_dimension_numbers<[1], [0], [0], [1], [0, 0, 1, 1], [], []>} : vector<2x32xf32>, vector<32x128xf32>, vector<2x128xf32> -> vector<2x128xf32>
    %439 = arith.addf %437, %438 : vector<2x128xf32>
    %440 = vector.extract_strided_slice %439 {offsets = [0, 0], sizes = [2, 96], strides = [1, 1]} : vector<2x128xf32> to vector<2x96xf32>
    %441 = arith.negf %440 : vector<2x96xf32>
    %442 = math.exp %441 : vector<2x96xf32>
    %cst_112 = arith.constant 1.000000e+00 : f32
    %443 = vector.broadcast %cst_112 : f32 to vector<2x96xf32>
    %444 = arith.addf %443, %442 : vector<2x96xf32>
    %445 = arith.divf %443, %444 : vector<2x96xf32>
    %446 = vector.extract_strided_slice %445 {offsets = [0, 0], sizes = [2, 32], strides = [1, 1]} : vector<2x96xf32> to vector<2x32xf32>
    %447 = vector.extract_strided_slice %445 {offsets = [0, 32], sizes = [2, 32], strides = [1, 1]} : vector<2x96xf32> to vector<2x32xf32>
    %448 = vector.extract_strided_slice %445 {offsets = [0, 64], sizes = [2, 32], strides = [1, 1]} : vector<2x96xf32> to vector<2x32xf32>
    %449 = vector.extract_strided_slice %439 {offsets = [0, 96], sizes = [2, 32], strides = [1, 1]} : vector<2x128xf32> to vector<2x32xf32>
    %450 = math.tanh %449 : vector<2x32xf32>
    %451 = arith.mulf %447, %433 : vector<2x32xf32>
    %452 = arith.mulf %446, %450 : vector<2x32xf32>
    %453 = arith.addf %451, %452 : vector<2x32xf32>
    %454 = math.tanh %453 : vector<2x32xf32>
    %455 = arith.mulf %448, %454 : vector<2x32xf32>
    %456 = vector.broadcast %c12_i32 : i32 to vector<2x32xi32>
    %457 = vector.broadcast %434 : i32 to vector<2x32xi32>
    %458 = arith.select %12, %456, %457 : vector<2x32xi1>, vector<2x32xi32>
    %459 = vector.broadcast %9 : vector<2x1xi32> to vector<2x32xi32>
    %460 = arith.cmpi sgt, %459, %458 : vector<2x32xi32>
    %cst_113 = arith.constant 0.000000e+00 : f32
    %461 = vector.broadcast %cst_113 : f32 to vector<2x32xf32>
    %462 = arith.select %460, %455, %461 : vector<2x32xi1>, vector<2x32xf32>
    %463 = arith.index_cast %c12_i32 : i32 to index
    %c0_114 = arith.constant 0 : index
    %c0_115 = arith.constant 0 : index
    %464 = vector.load %arg5[%463, %c0_114, %c0_115] : memref<16x2x32xf32, #tpu.memory_space<vmem>>, vector<1x2x32xf32>
    %465 = vector.shape_cast %464 : vector<1x2x32xf32> to vector<2x32xf32>
    %466 = vector.shape_cast %462 : vector<2x32xf32> to vector<1x2x32xf32>
    tpu.vector_store %arg5[%463, %c0_114, %c0_115], %466 {strides = array<i32>} : memref<16x2x32xf32, #tpu.memory_space<vmem>>, vector<1x2x32xf32>,
    %467 = arith.select %460, %455, %432 : vector<2x32xi1>, vector<2x32xf32>
    %468 = arith.select %460, %453, %433 : vector<2x32xi1>, vector<2x32xf32>
    %c13_i32 = arith.constant 13 : i32
    %c15_i32_116 = arith.constant 15 : i32
    %469 = arith.subi %c15_i32_116, %c13_i32 : i32
    %470 = arith.index_cast %c13_i32 : i32 to index
    %c0_117 = arith.constant 0 : index
    %c0_118 = arith.constant 0 : index
    %471 = vector.load %arg6[%470, %c0_117, %c0_118] : memref<16x2x128xf32, #tpu.memory_space<vmem>>, vector<1x2x128xf32>
    %472 = vector.shape_cast %471 : vector<1x2x128xf32> to vector<2x128xf32>
    %cst_119 = arith.constant dense<0.000000e+00> : vector<2x128xf32>
    %473 = tpu.matmul %467, %8, %cst_119 {dimension_numbers = #tpu.dot_dimension_numbers<[1], [0], [0], [1], [0, 0, 1, 1], [], []>} : vector<2x32xf32>, vector<32x128xf32>, vector<2x128xf32> -> vector<2x128xf32>
    %474 = arith.addf %472, %473 : vector<2x128xf32>
    %475 = vector.extract_strided_slice %474 {offsets = [0, 0], sizes = [2, 96], strides = [1, 1]} : vector<2x128xf32> to vector<2x96xf32>
    %476 = arith.negf %475 : vector<2x96xf32>
    %477 = math.exp %476 : vector<2x96xf32>
    %cst_120 = arith.constant 1.000000e+00 : f32
    %478 = vector.broadcast %cst_120 : f32 to vector<2x96xf32>
    %479 = arith.addf %478, %477 : vector<2x96xf32>
    %480 = arith.divf %478, %479 : vector<2x96xf32>
    %481 = vector.extract_strided_slice %480 {offsets = [0, 0], sizes = [2, 32], strides = [1, 1]} : vector<2x96xf32> to vector<2x32xf32>
    %482 = vector.extract_strided_slice %480 {offsets = [0, 32], sizes = [2, 32], strides = [1, 1]} : vector<2x96xf32> to vector<2x32xf32>
    %483 = vector.extract_strided_slice %480 {offsets = [0, 64], sizes = [2, 32], strides = [1, 1]} : vector<2x96xf32> to vector<2x32xf32>
    %484 = vector.extract_strided_slice %474 {offsets = [0, 96], sizes = [2, 32], strides = [1, 1]} : vector<2x128xf32> to vector<2x32xf32>
    %485 = math.tanh %484 : vector<2x32xf32>
    %486 = arith.mulf %482, %468 : vector<2x32xf32>
    %487 = arith.mulf %481, %485 : vector<2x32xf32>
    %488 = arith.addf %486, %487 : vector<2x32xf32>
    %489 = math.tanh %488 : vector<2x32xf32>
    %490 = arith.mulf %483, %489 : vector<2x32xf32>
    %491 = vector.broadcast %c13_i32 : i32 to vector<2x32xi32>
    %492 = vector.broadcast %469 : i32 to vector<2x32xi32>
    %493 = arith.select %12, %491, %492 : vector<2x32xi1>, vector<2x32xi32>
    %494 = vector.broadcast %9 : vector<2x1xi32> to vector<2x32xi32>
    %495 = arith.cmpi sgt, %494, %493 : vector<2x32xi32>
    %cst_121 = arith.constant 0.000000e+00 : f32
    %496 = vector.broadcast %cst_121 : f32 to vector<2x32xf32>
    %497 = arith.select %495, %490, %496 : vector<2x32xi1>, vector<2x32xf32>
    %498 = arith.index_cast %c13_i32 : i32 to index
    %c0_122 = arith.constant 0 : index
    %c0_123 = arith.constant 0 : index
    %499 = vector.load %arg5[%498, %c0_122, %c0_123] : memref<16x2x32xf32, #tpu.memory_space<vmem>>, vector<1x2x32xf32>
    %500 = vector.shape_cast %499 : vector<1x2x32xf32> to vector<2x32xf32>
    %501 = vector.shape_cast %497 : vector<2x32xf32> to vector<1x2x32xf32>
    tpu.vector_store %arg5[%498, %c0_122, %c0_123], %501 {strides = array<i32>} : memref<16x2x32xf32, #tpu.memory_space<vmem>>, vector<1x2x32xf32>,
    %502 = arith.select %495, %490, %467 : vector<2x32xi1>, vector<2x32xf32>
    %503 = arith.select %495, %488, %468 : vector<2x32xi1>, vector<2x32xf32>
    %c14_i32 = arith.constant 14 : i32
    %c15_i32_124 = arith.constant 15 : i32
    %504 = arith.subi %c15_i32_124, %c14_i32 : i32
    %505 = arith.index_cast %c14_i32 : i32 to index
    %c0_125 = arith.constant 0 : index
    %c0_126 = arith.constant 0 : index
    %506 = vector.load %arg6[%505, %c0_125, %c0_126] : memref<16x2x128xf32, #tpu.memory_space<vmem>>, vector<1x2x128xf32>
    %507 = vector.shape_cast %506 : vector<1x2x128xf32> to vector<2x128xf32>
    %cst_127 = arith.constant dense<0.000000e+00> : vector<2x128xf32>
    %508 = tpu.matmul %502, %8, %cst_127 {dimension_numbers = #tpu.dot_dimension_numbers<[1], [0], [0], [1], [0, 0, 1, 1], [], []>} : vector<2x32xf32>, vector<32x128xf32>, vector<2x128xf32> -> vector<2x128xf32>
    %509 = arith.addf %507, %508 : vector<2x128xf32>
    %510 = vector.extract_strided_slice %509 {offsets = [0, 0], sizes = [2, 96], strides = [1, 1]} : vector<2x128xf32> to vector<2x96xf32>
    %511 = arith.negf %510 : vector<2x96xf32>
    %512 = math.exp %511 : vector<2x96xf32>
    %cst_128 = arith.constant 1.000000e+00 : f32
    %513 = vector.broadcast %cst_128 : f32 to vector<2x96xf32>
    %514 = arith.addf %513, %512 : vector<2x96xf32>
    %515 = arith.divf %513, %514 : vector<2x96xf32>
    %516 = vector.extract_strided_slice %515 {offsets = [0, 0], sizes = [2, 32], strides = [1, 1]} : vector<2x96xf32> to vector<2x32xf32>
    %517 = vector.extract_strided_slice %515 {offsets = [0, 32], sizes = [2, 32], strides = [1, 1]} : vector<2x96xf32> to vector<2x32xf32>
    %518 = vector.extract_strided_slice %515 {offsets = [0, 64], sizes = [2, 32], strides = [1, 1]} : vector<2x96xf32> to vector<2x32xf32>
    %519 = vector.extract_strided_slice %509 {offsets = [0, 96], sizes = [2, 32], strides = [1, 1]} : vector<2x128xf32> to vector<2x32xf32>
    %520 = math.tanh %519 : vector<2x32xf32>
    %521 = arith.mulf %517, %503 : vector<2x32xf32>
    %522 = arith.mulf %516, %520 : vector<2x32xf32>
    %523 = arith.addf %521, %522 : vector<2x32xf32>
    %524 = math.tanh %523 : vector<2x32xf32>
    %525 = arith.mulf %518, %524 : vector<2x32xf32>
    %526 = vector.broadcast %c14_i32 : i32 to vector<2x32xi32>
    %527 = vector.broadcast %504 : i32 to vector<2x32xi32>
    %528 = arith.select %12, %526, %527 : vector<2x32xi1>, vector<2x32xi32>
    %529 = vector.broadcast %9 : vector<2x1xi32> to vector<2x32xi32>
    %530 = arith.cmpi sgt, %529, %528 : vector<2x32xi32>
    %cst_129 = arith.constant 0.000000e+00 : f32
    %531 = vector.broadcast %cst_129 : f32 to vector<2x32xf32>
    %532 = arith.select %530, %525, %531 : vector<2x32xi1>, vector<2x32xf32>
    %533 = arith.index_cast %c14_i32 : i32 to index
    %c0_130 = arith.constant 0 : index
    %c0_131 = arith.constant 0 : index
    %534 = vector.load %arg5[%533, %c0_130, %c0_131] : memref<16x2x32xf32, #tpu.memory_space<vmem>>, vector<1x2x32xf32>
    %535 = vector.shape_cast %534 : vector<1x2x32xf32> to vector<2x32xf32>
    %536 = vector.shape_cast %532 : vector<2x32xf32> to vector<1x2x32xf32>
    tpu.vector_store %arg5[%533, %c0_130, %c0_131], %536 {strides = array<i32>} : memref<16x2x32xf32, #tpu.memory_space<vmem>>, vector<1x2x32xf32>,
    %537 = arith.select %530, %525, %502 : vector<2x32xi1>, vector<2x32xf32>
    %538 = arith.select %530, %523, %503 : vector<2x32xi1>, vector<2x32xf32>
    %c15_i32_132 = arith.constant 15 : i32
    %c15_i32_133 = arith.constant 15 : i32
    %539 = arith.subi %c15_i32_133, %c15_i32_132 : i32
    %540 = arith.index_cast %c15_i32_132 : i32 to index
    %c0_134 = arith.constant 0 : index
    %c0_135 = arith.constant 0 : index
    %541 = vector.load %arg6[%540, %c0_134, %c0_135] : memref<16x2x128xf32, #tpu.memory_space<vmem>>, vector<1x2x128xf32>
    %542 = vector.shape_cast %541 : vector<1x2x128xf32> to vector<2x128xf32>
    %cst_136 = arith.constant dense<0.000000e+00> : vector<2x128xf32>
    %543 = tpu.matmul %537, %8, %cst_136 {dimension_numbers = #tpu.dot_dimension_numbers<[1], [0], [0], [1], [0, 0, 1, 1], [], []>} : vector<2x32xf32>, vector<32x128xf32>, vector<2x128xf32> -> vector<2x128xf32>
    %544 = arith.addf %542, %543 : vector<2x128xf32>
    %545 = vector.extract_strided_slice %544 {offsets = [0, 0], sizes = [2, 96], strides = [1, 1]} : vector<2x128xf32> to vector<2x96xf32>
    %546 = arith.negf %545 : vector<2x96xf32>
    %547 = math.exp %546 : vector<2x96xf32>
    %cst_137 = arith.constant 1.000000e+00 : f32
    %548 = vector.broadcast %cst_137 : f32 to vector<2x96xf32>
    %549 = arith.addf %548, %547 : vector<2x96xf32>
    %550 = arith.divf %548, %549 : vector<2x96xf32>
    %551 = vector.extract_strided_slice %550 {offsets = [0, 0], sizes = [2, 32], strides = [1, 1]} : vector<2x96xf32> to vector<2x32xf32>
    %552 = vector.extract_strided_slice %550 {offsets = [0, 32], sizes = [2, 32], strides = [1, 1]} : vector<2x96xf32> to vector<2x32xf32>
    %553 = vector.extract_strided_slice %550 {offsets = [0, 64], sizes = [2, 32], strides = [1, 1]} : vector<2x96xf32> to vector<2x32xf32>
    %554 = vector.extract_strided_slice %544 {offsets = [0, 96], sizes = [2, 32], strides = [1, 1]} : vector<2x128xf32> to vector<2x32xf32>
    %555 = math.tanh %554 : vector<2x32xf32>
    %556 = arith.mulf %552, %538 : vector<2x32xf32>
    %557 = arith.mulf %551, %555 : vector<2x32xf32>
    %558 = arith.addf %556, %557 : vector<2x32xf32>
    %559 = math.tanh %558 : vector<2x32xf32>
    %560 = arith.mulf %553, %559 : vector<2x32xf32>
    %561 = vector.broadcast %c15_i32_132 : i32 to vector<2x32xi32>
    %562 = vector.broadcast %539 : i32 to vector<2x32xi32>
    %563 = arith.select %12, %561, %562 : vector<2x32xi1>, vector<2x32xi32>
    %564 = vector.broadcast %9 : vector<2x1xi32> to vector<2x32xi32>
    %565 = arith.cmpi sgt, %564, %563 : vector<2x32xi32>
    %cst_138 = arith.constant 0.000000e+00 : f32
    %566 = vector.broadcast %cst_138 : f32 to vector<2x32xf32>
    %567 = arith.select %565, %560, %566 : vector<2x32xi1>, vector<2x32xf32>
    %568 = arith.index_cast %c15_i32_132 : i32 to index
    %c0_139 = arith.constant 0 : index
    %c0_140 = arith.constant 0 : index
    %569 = vector.load %arg5[%568, %c0_139, %c0_140] : memref<16x2x32xf32, #tpu.memory_space<vmem>>, vector<1x2x32xf32>
    %570 = vector.shape_cast %569 : vector<1x2x32xf32> to vector<2x32xf32>
    %571 = vector.shape_cast %567 : vector<2x32xf32> to vector<1x2x32xf32>
    tpu.vector_store %arg5[%568, %c0_139, %c0_140], %571 {strides = array<i32>} : memref<16x2x32xf32, #tpu.memory_space<vmem>>, vector<1x2x32xf32>,
    %572 = arith.select %565, %560, %537 : vector<2x32xi1>, vector<2x32xf32>
    %573 = arith.select %565, %558, %538 : vector<2x32xi1>, vector<2x32xf32>
    %c16_i32_141 = arith.constant 16 : i32
    return
  }
}

</mosaic_0001>

<llo_original>
// kernel: tpu_custom_call.1
$region0: #{tpu_custom_call.1}
  #allocation0 [shape = 'u32[]', space=smem, size = 0x4, offset = 0x4, fixed_abs, tag = 'smem constant byte address 0x4 - core index']
  #allocation1 [shape = 'u32[144,128]{1,0:T(1,128)}', space=vmem, size = 0x12000, scoped, tag = 'internal scratch']
  #allocation2 [shape = 'f32[16,2,128]{2,1,0:T(2,128)}', space=vmem, size = 0x4000, scoped, tag = 'scratch operand']
  %s0 = inlined_call_operand.hbm [shape: f32[32,64], index: 0, kind: input, shape index: {}]
  %s1 = inlined_call_operand.vmem [shape: s32[2,1], index: 1, kind: input, shape index: {}]
  %s2 = inlined_call_operand.hbm [shape: f32[64,128], index: 2, kind: input, shape index: {}]
  %s3 = inlined_call_operand.hbm [shape: f32[32,128], index: 3, kind: input, shape index: {}]
  %s4 = inlined_call_operand.vmem [shape: f32[1,128], index: 4, kind: input, shape index: {}]
  %s5 = inlined_call_operand.hbm [shape: f32[16,2,32], index: 5, kind: output, shape index: {}]
  %s6 = sld [smem:[#allocation0]]
  $region42: #{tpu_custom_call.1} parent=0
    _
  %s8 = ssub.s32 1, %s6
  %s9 = scalar_select 0, %s8, %s6
  $region1: #{tpu_custom_call.1} parent=0
    #allocation3 [shape = 'u8[16384]{0}', space=vmem, size = 0x4000, scoped, tag = 'input window, operand 0, single buffered']
    #allocation4 [shape = 's32[1]{0}', space=sflag, size = 0x4, scoped, tag = 'scoped memory for tpu_custom_call.1']
    #allocation5 [shape = 's32[1]{0}', space=sflag, size = 0x4, scoped, tag = 'scoped memory for tpu_custom_call.1']
    #allocation6 [shape = 'u8[32768]{0}', space=vmem, size = 0x8000, scoped, tag = 'input window, operand 2, single buffered']
    #allocation7 [shape = 's32[1]{0}', space=sflag, size = 0x4, scoped, tag = 'scoped memory for tpu_custom_call.1']
    #allocation8 [shape = 'u8[16384]{0}', space=vmem, size = 0x4000, scoped, tag = 'input window, operand 3, single buffered']
    #allocation9 [shape = 'u8[16384]{0}', space=vmem, size = 0x4000, scoped, tag = 'output window, operand 0, single buffered']
    %10 = vsyncpa [#allocation4], 0
    %11 = vsyncpa [#allocation7], 0
    %12 = vsyncpa [#allocation5], 0
    // Predicated region
    $region2: #{tpu_custom_call.1} parent=1 // pred_check
      _
    $region3: #{tpu_custom_call.1} parent=1 // pred_check_branch
      %14 = sbr.rel (0) target = $region5
    $region4: #{tpu_custom_call.1} parent=1 // pred_region
      %s16 = ssub.s32 512, 512
      %17 = vsyncadd [#allocation4], %s16
      %s18 = sshll.u32 [#allocation3], 4
      %s19 = int_to_ptr.vmem [resolvable:$true] %s18
      %24 = dma.hbm_to_vmem [thread:$0]  %s0, 512, %s19, [#allocation4], 128, 128, 8
    $region5: #{tpu_custom_call.1} parent=1 // pred_fallthru
      _
    // Predicated region
    $region6: #{tpu_custom_call.1} parent=1 // pred_check
      _
    $region7: #{tpu_custom_call.1} parent=1 // pred_check_branch
      %26 = sbr.rel (0) target = $region9
    $region8: #{tpu_custom_call.1} parent=1 // pred_region
      _
    $region9: #{tpu_custom_call.1} parent=1 // pred_fallthru
      _
    // Predicated region
    $region10: #{tpu_custom_call.1} parent=1 // pred_check
      _
    $region11: #{tpu_custom_call.1} parent=1 // pred_check_branch
      %28 = sbr.rel (0) target = $region13
    $region12: #{tpu_custom_call.1} parent=1 // pred_region
      %s30 = ssub.s32 1024, 1024
      %31 = vsyncadd [#allocation7], %s30
      %s32 = sshll.u32 [#allocation6], 4
      %s33 = int_to_ptr.vmem [resolvable:$true] %s32
      %38 = dma.hbm_to_vmem [thread:$0]  %s2, 1024, %s33, [#allocation7], 128, 128, 8
    $region13: #{tpu_custom_call.1} parent=1 // pred_fallthru
      _
    // Predicated region
    $region14: #{tpu_custom_call.1} parent=1 // pred_check
      _
    $region15: #{tpu_custom_call.1} parent=1 // pred_check_branch
      %40 = sbr.rel (0) target = $region17
    $region16: #{tpu_custom_call.1} parent=1 // pred_region
      %s42 = ssub.s32 512, 512
      %43 = vsyncadd [#allocation7], %s42
      %s44 = sshll.u32 [#allocation8], 4
      %s45 = int_to_ptr.vmem [resolvable:$true] %s44
      %50 = dma.hbm_to_vmem [thread:$0]  %s3, 512, %s45, [#allocation7], 128, 128, 8
    $region17: #{tpu_custom_call.1} parent=1 // pred_fallthru
      _
    // Predicated region
    $region18: #{tpu_custom_call.1} parent=1 // pred_check
      _
    $region19: #{tpu_custom_call.1} parent=1 // pred_check_branch
      %52 = sbr.rel (0) target = $region21
    $region20: #{tpu_custom_call.1} parent=1 // pred_region
      _
    $region21: #{tpu_custom_call.1} parent=1 // pred_fallthru
      _
    // Predicated region
    $region22: #{tpu_custom_call.1} parent=1 // pred_check
      _
    $region23: #{tpu_custom_call.1} parent=1 // pred_check_branch
      %54 = sbr.rel (0) target = $region25
    $region24: #{tpu_custom_call.1} parent=1 // pred_region
      %55 = dma.done [#allocation4], 512
    $region25: #{tpu_custom_call.1} parent=1 // pred_fallthru
      _
    // Predicated region
    $region26: #{tpu_custom_call.1} parent=1 // pred_check
      _
    $region27: #{tpu_custom_call.1} parent=1 // pred_check_branch
      %57 = sbr.rel (0) target = $region29
    $region28: #{tpu_custom_call.1} parent=1 // pred_region
      %58 = dma.done [#allocation7], 1024
    $region29: #{tpu_custom_call.1} parent=1 // pred_fallthru
      _
    // Predicated region
    $region30: #{tpu_custom_call.1} parent=1 // pred_check
      _
    $region31: #{tpu_custom_call.1} parent=1 // pred_check_branch
      %60 = sbr.rel (0) target = $region33
    $region32: #{tpu_custom_call.1} parent=1 // pred_region
      %61 = dma.done [#allocation7], 512
    $region33: #{tpu_custom_call.1} parent=1 // pred_fallthru
      _
    %v62 = vld [vmem:[#allocation3] sm:$0xff]
    %v63 = vld [vmem:[#allocation3 + $0x8] sm:$0xff]
    %v64 = vld [vmem:[#allocation3 + $0x10] sm:$0xff]
    %v65 = vld [vmem:[#allocation3 + $0x18] sm:$0xff]
    %v66 = vld [vmem:[#allocation6] sm:$0xff]
    %v67 = vld [vmem:[#allocation6 + $0x8] sm:$0xff]
    %v68 = vld [vmem:[#allocation6 + $0x10] sm:$0xff]
    %v69 = vld [vmem:[#allocation6 + $0x18] sm:$0xff]
    %v70 = vld [vmem:[#allocation6 + $0x20] sm:$0xff]
    %v71 = vld [vmem:[#allocation6 + $0x28] sm:$0xff]
    %v72 = vld [vmem:[#allocation6 + $0x30] sm:$0xff]
    %v73 = vld [vmem:[#allocation6 + $0x38] sm:$0xff]
    %v74 = vld [vmem:[%s4] sm:$0x1]
    %v76 = vlaneseq
    %v77 = vshrl.u32 %v76, 7
    %v78 = vsub.s32 0, %v77
    %v79 = vrot.slane %v74, %v78
    %vm81 = vcmask 523264
    %v83 = vsel %vm81, %v62, 0
    %v86 = vsel %vm81, %v63, 0
    %v89 = vsel %vm81, %v64, 0
    %v92 = vsel %vm81, %v65, 0
    %94 = vmatprep.subr.mxu0 0.0
    %95 = vmatpush1.msra.mxu0 %v66
    %96 = vmatprep.subr.mxu0 0.0
    %97 = vmatpush1.msra.mxu0 %v67
    %98 = vmatprep.subr.mxu0 0.0
    %99 = vmatpush1.msra.mxu0 %v68
    %100 = vmatprep.subr.mxu0 0.0
    %101 = vmatpush1.msra.mxu0 %v69
    %102 = vmatprep.subr.mxu0 0.0
    %103 = vmatpush1.msra.mxu0 %v70
    %104 = vmatprep.subr.mxu0 0.0
    %105 = vmatpush1.msra.mxu0 %v71
    %106 = vmatprep.subr.mxu0 0.0
    %107 = vmatpush1.msra.mxu0 %v72
    %108 = vmatprep.subr.mxu0 0.0
    %109 = vmatpush1.msra.mxu0 %v73
    %110 = vmatprep.subr.mxu0 0.0
    %111 = vmatpush1.msra.mxu0 0.0
    %112 = vmatprep.subr.mxu0 0.0
    %113 = vmatpush1.msra.mxu0 0.0
    %114 = vmatprep.subr.mxu0 0.0
    %115 = vmatpush1.msra.mxu0 0.0
    %116 = vmatprep.subr.mxu0 0.0
    %117 = vmatpush1.msra.mxu0 0.0
    %118 = vmatprep.subr.mxu0 0.0
    %119 = vmatpush1.msra.mxu0 0.0
    %120 = vmatprep.subr.mxu0 0.0
    %121 = vmatpush1.msra.mxu0 0.0
    %122 = vmatprep.subr.mxu0 0.0
    %123 = vmatpush1.msra.mxu0 0.0
    %124 = vmatprep.subr.mxu0 0.0
    %125 = vmatpush1.msra.mxu0 0.0
    %126 = vmatprep.subr.mxu0 0.0
    %127 = vmatpush1.msra.mxu0 0.0
    %128 = vmatprep.subr.mxu0 0.0
    %129 = vmatpush1.msra.mxu0 0.0
    %130 = vmatprep.subr.mxu0 0.0
    %131 = vmatpush1.msra.mxu0 0.0
    %132 = vmatprep.subr.mxu0 0.0
    %133 = vmatpush1.msra.mxu0 0.0
    %134 = vmatprep.subr.mxu0 0.0
    %135 = vmatpush1.msra.mxu0 0.0
    %136 = vmatprep.subr.mxu0 0.0
    %137 = vmatpush1.msra.mxu0 0.0
    %138 = vmatprep.subr.mxu0 0.0
    %139 = vmatpush1.msra.mxu0 0.0
    %140 = vmatprep.subr.mxu0 0.0
    %141 = vmatpush1.msra.mxu0 0.0
    %142 = vmatprep.subr.mxu0 0.0
    %143 = vmatpush1.msra.mxu0 0.0
    %144 = vmatprep.subr.mxu0 0.0
    %145 = vmatpush1.msra.mxu0 0.0
    %146 = vmatprep.subr.mxu0 0.0
    %147 = vmatpush1.msra.mxu0 0.0
    %148 = vmatprep.subr.mxu0 0.0
    %149 = vmatpush1.msra.mxu0 0.0
    %150 = vmatprep.subr.mxu0 0.0
    %151 = vmatpush1.msra.mxu0 0.0
    %152 = vmatprep.subr.mxu0 0.0
    %153 = vmatpush1.msra.mxu0 0.0
    %154 = vmatprep.subr.mxu0 0.0
    %155 = vmatpush1.msra.mxu0 0.0
    %156 = vmatprep.subr.mxu0 0.0
    %157 = vmatpush1.msra.mxu0 0.0
    %158 = vmatprep.mubr.f32.mxu0 0.0
    %159 = vmatmul.mubr.f32.gmra.mrb[0].mxu0 %v83
    %v160 = vpop.f32.mrb[0].mxu0
    %v161 = vadd.f32 %v79, %v160
    %v162 = vpop.f32.mrb[0].mxu0
    %163 = vmatprep.mubr.f32.mxu0 0.0
    %164 = vmatmul.mubr.f32.gmra.mrb[0].mxu0 %v86
    %v165 = vpop.f32.mrb[0].mxu0
    %v166 = vadd.f32 %v79, %v165
    %v167 = vpop.f32.mrb[0].mxu0
    %168 = vmatprep.mubr.f32.mxu0 0.0
    %169 = vmatmul.mubr.f32.gmra.mrb[0].mxu0 %v89
    %v170 = vpop.f32.mrb[0].mxu0
    %v171 = vadd.f32 %v79, %v170
    %v172 = vpop.f32.mrb[0].mxu0
    %173 = vmatprep.mubr.f32.mxu0 0.0
    %174 = vmatmul.mubr.f32.gmra.mrb[0].mxu0 %v92
    %v175 = vpop.f32.mrb[0].mxu0
    %v176 = vadd.f32 %v79, %v175
    %v177 = vpop.f32.mrb[0].mxu0
    %178 = vdwg.mxu0
    %v183 = vcombine.high %v161, %v161
    %v185 = vunpack.c.l.s4 1983009808
    %v186 = vunpack.c.0.s8 %v185
    %v187 = vlaneseq
    %v188 = vshrl.u32 %v187, 7
    %v189 = vsub.s32 %v186, %v188
    %v190 = vrot.slane %v161, %v189
    %v192 = vunpack.c.l.s4 1983009808
    %v193 = vunpack.c.0.s8 %v192
    %v194 = vlaneseq
    %v195 = vshrl.u32 %v194, 7
    %v196 = vsub.s32 %v193, %v195
    %v197 = vrot.slane %v183, %v196
    %v198 = vcombine.high %v190, %v190
    %v199 = vcombine.high %v197, %v197
    %v200 = vcombine.high %v166, %v166
    %v202 = vunpack.c.l.s4 1983009808
    %v203 = vunpack.c.0.s8 %v202
    %v204 = vlaneseq
    %v205 = vshrl.u32 %v204, 7
    %v206 = vsub.s32 %v203, %v205
    %v207 = vrot.slane %v166, %v206
    %v209 = vunpack.c.l.s4 1983009808
    %v210 = vunpack.c.0.s8 %v209
    %v211 = vlaneseq
    %v212 = vshrl.u32 %v211, 7
    %v213 = vsub.s32 %v210, %v212
    %v214 = vrot.slane %v200, %v213
    %v215 = vcombine.high %v207, %v207
    %v216 = vcombine.high %v214, %v214
    %v217 = vcombine.high %v171, %v171
    %v219 = vunpack.c.l.s4 1983009808
    %v220 = vunpack.c.0.s8 %v219
    %v221 = vlaneseq
    %v222 = vshrl.u32 %v221, 7
    %v223 = vsub.s32 %v220, %v222
    %v224 = vrot.slane %v171, %v223
    %v226 = vunpack.c.l.s4 1983009808
    %v227 = vunpack.c.0.s8 %v226
    %v228 = vlaneseq
    %v229 = vshrl.u32 %v228, 7
    %v230 = vsub.s32 %v227, %v229
    %v231 = vrot.slane %v217, %v230
    %v232 = vcombine.high %v224, %v224
    %v233 = vcombine.high %v231, %v231
    %v234 = vcombine.high %v176, %v176
    %v236 = vunpack.c.l.s4 1983009808
    %v237 = vunpack.c.0.s8 %v236
    %v238 = vlaneseq
    %v239 = vshrl.u32 %v238, 7
    %v240 = vsub.s32 %v237, %v239
    %v241 = vrot.slane %v176, %v240
    %v243 = vunpack.c.l.s4 1983009808
    %v244 = vunpack.c.0.s8 %v243
    %v245 = vlaneseq
    %v246 = vshrl.u32 %v245, 7
    %v247 = vsub.s32 %v244, %v246
    %v248 = vrot.slane %v234, %v247
    %v249 = vcombine.high %v241, %v241
    %v250 = vcombine.high %v248, %v248
    %267 = vst [vmem:[#allocation2] sm:$0x3] %v190
    %268 = vst [vmem:[#allocation2 + $0x2] sm:$0x3] %v198
    %269 = vst [vmem:[#allocation2 + $0x4] sm:$0x3] %v197
    %270 = vst [vmem:[#allocation2 + $0x6] sm:$0x3] %v199
    %271 = vst [vmem:[#allocation2 + $0x8] sm:$0x3] %v207
    %272 = vst [vmem:[#allocation2 + $0xa] sm:$0x3] %v215
    %273 = vst [vmem:[#allocation2 + $0xc] sm:$0x3] %v214
    %274 = vst [vmem:[#allocation2 + $0xe] sm:$0x3] %v216
    %275 = vst [vmem:[#allocation2 + $0x10] sm:$0x3] %v224
    %276 = vst [vmem:[#allocation2 + $0x12] sm:$0x3] %v232
    %277 = vst [vmem:[#allocation2 + $0x14] sm:$0x3] %v231
    %278 = vst [vmem:[#allocation2 + $0x16] sm:$0x3] %v233
    %279 = vst [vmem:[#allocation2 + $0x18] sm:$0x3] %v241
    %280 = vst [vmem:[#allocation2 + $0x1a] sm:$0x3] %v249
    %281 = vst [vmem:[#allocation2 + $0x1c] sm:$0x3] %v248
    %282 = vst [vmem:[#allocation2 + $0x1e] sm:$0x3] %v250
    %v283 = vld [vmem:[#allocation8] sm:$0xff]
    %v284 = vld [vmem:[#allocation8 + $0x8] sm:$0xff]
    %v285 = vld [vmem:[#allocation8 + $0x10] sm:$0xff]
    %v286 = vld [vmem:[#allocation8 + $0x18] sm:$0xff]
    %v287 = vld [vmem:[%s1] sm:$0x3]
    %v288 = vlaneseq
    %v289 = vand.u32 %v288, 127
    %vm290 = vcmp.lt.s32.totalorder %v289, 16
    %v291 = vld [vmem:[#allocation2] sm:$0x3]
    %vm292 = vcmask 261120
    %v294 = vsel %vm292, 0.0, 0
    %296 = vmatprep.subr.mxu0 0.0
    %297 = vmatpush1.msra.mxu0 %v283
    %298 = vmatprep.subr.mxu0 0.0
    %299 = vmatpush1.msra.mxu0 %v284
    %300 = vmatprep.subr.mxu0 0.0
    %301 = vmatpush1.msra.mxu0 %v285
    %302 = vmatprep.subr.mxu0 0.0
    %303 = vmatpush1.msra.mxu0 %v286
    %304 = vmatprep.subr.mxu0 0.0
    %305 = vmatpush1.msra.mxu0 0.0
    %306 = vmatprep.subr.mxu0 0.0
    %307 = vmatpush1.msra.mxu0 0.0
    %308 = vmatprep.subr.mxu0 0.0
    %309 = vmatpush1.msra.mxu0 0.0
    %310 = vmatprep.subr.mxu0 0.0
    %311 = vmatpush1.msra.mxu0 0.0
    %312 = vmatprep.subr.mxu0 0.0
    %313 = vmatpush1.msra.mxu0 0.0
    %314 = vmatprep.subr.mxu0 0.0
    %315 = vmatpush1.msra.mxu0 0.0
    %316 = vmatprep.subr.mxu0 0.0
    %317 = vmatpush1.msra.mxu0 0.0
    %318 = vmatprep.subr.mxu0 0.0
    %319 = vmatpush1.msra.mxu0 0.0
    %320 = vmatprep.subr.mxu0 0.0
    %321 = vmatpush1.msra.mxu0 0.0
    %322 = vmatprep.subr.mxu0 0.0
    %323 = vmatpush1.msra.mxu0 0.0
    %324 = vmatprep.subr.mxu0 0.0
    %325 = vmatpush1.msra.mxu0 0.0
    %326 = vmatprep.subr.mxu0 0.0
    %327 = vmatpush1.msra.mxu0 0.0
    %328 = vmatprep.subr.mxu0 0.0
    %329 = vmatpush1.msra.mxu0 0.0
    %330 = vmatprep.subr.mxu0 0.0
    %331 = vmatpush1.msra.mxu0 0.0
    %332 = vmatprep.subr.mxu0 0.0
    %333 = vmatpush1.msra.mxu0 0.0
    %334 = vmatprep.subr.mxu0 0.0
    %335 = vmatpush1.msra.mxu0 0.0
    %336 = vmatprep.subr.mxu0 0.0
    %337 = vmatpush1.msra.mxu0 0.0
    %338 = vmatprep.subr.mxu0 0.0
    %339 = vmatpush1.msra.mxu0 0.0
    %340 = vmatprep.subr.mxu0 0.0
    %341 = vmatpush1.msra.mxu0 0.0
    %342 = vmatprep.subr.mxu0 0.0
    %343 = vmatpush1.msra.mxu0 0.0
    %344 = vmatprep.subr.mxu0 0.0
    %345 = vmatpush1.msra.mxu0 0.0
    %346 = vmatprep.subr.mxu0 0.0
    %347 = vmatpush1.msra.mxu0 0.0
    %348 = vmatprep.subr.mxu0 0.0
    %349 = vmatpush1.msra.mxu0 0.0
    %350 = vmatprep.subr.mxu0 0.0
    %351 = vmatpush1.msra.mxu0 0.0
    %352 = vmatprep.subr.mxu0 0.0
    %353 = vmatpush1.msra.mxu0 0.0
    %354 = vmatprep.subr.mxu0 0.0
    %355 = vmatpush1.msra.mxu0 0.0
    %356 = vmatprep.subr.mxu0 0.0
    %357 = vmatpush1.msra.mxu0 0.0
    %358 = vmatprep.subr.mxu0 0.0
    %359 = vmatpush1.msra.mxu0 0.0
    %360 = vmatprep.mubr.f32.mxu0 0.0
    %361 = vmatmul.mubr.f32.gmra.mrb[0].mxu0 %v294
    %v362 = vpop.f32.mrb[0].mxu0
    %v363 = vadd.f32 0.0, %v362
    %v364 = vpop.f32.mrb[0].mxu0
    %365 = vdwg.mxu0
    %v366 = vadd.f32 %v291, %v363
    %v367 = vxor.u32 %v366, 2147483648
    %v368 = vmul.f32 %v367, 1.442695
    %v369 = vpow.pop %v368
    %v370 = vadd.f32 %v369, 1.0
    %v371 = vrcp.pop %v370
    %v372 = vmul.f32 1.0, %v371
    %v373 = vtanh.pop %v366
    %v374 = vmul.f32 %v372, 0.0
    %376 = vrot.lane.b32.xlu0 %v373, 32
    %v377 = vpop.permute.xlu0 %376
    %v379 = vmul.f32 %v372, %v377
    %381 = vrot.lane.b32.xlu0 %v379, 32
    %v382 = vpop.permute.xlu0 %381
    %v384 = vadd.f32 %v374, %v382
    %v385 = vtanh.pop %v384
    %387 = vrot.lane.b32.xlu0 %v385, 32
    %v388 = vpop.permute.xlu0 %387
    %v390 = vmul.f32 %v372, %v388
    %v391 = vsel %vm290, 0, 15
    %392 = vset.pattern.permute.xlu0 0
    %393 = vperm.xlu0 %392, %v287
    %v394 = vpop.permute.xlu0 %393
    %vm395 = vcmp.gt.s32.totalorder %v394, %v391
    %397 = vrot.lane.b32.xlu0 %v390, 64
    %v398 = vpop.permute.xlu0 %397
    %v400 = vsel %vm395, %v398, 0.0
    %vm401 = vcmask 254976
    %402 = vst.msk [vmem:[#allocation9] sm:$0x3] %vm401, %v400
    %404 = vrot.lane.b32.xlu0 %v384, 96
    %v405 = vpop.permute.xlu0 %404
    %v407 = vsel %vm395, %v405, 0.0
    %s408 = scalar_lea.vmem [#allocation2], 2
    %v409 = vld [vmem:[%s408] sm:$0x3]
    %v411 = vsel %vm292, %v400, 0
    %413 = vmatprep.subr.mxu0 0.0
    %414 = vmatpush1.msra.mxu0 %v283
    %415 = vmatprep.subr.mxu0 0.0
    %416 = vmatpush1.msra.mxu0 %v284
    %417 = vmatprep.subr.mxu0 0.0
    %418 = vmatpush1.msra.mxu0 %v285
    %419 = vmatprep.subr.mxu0 0.0
    %420 = vmatpush1.msra.mxu0 %v286
    %421 = vmatprep.subr.mxu0 0.0
    %422 = vmatpush1.msra.mxu0 0.0
    %423 = vmatprep.subr.mxu0 0.0
    %424 = vmatpush1.msra.mxu0 0.0
    %425 = vmatprep.subr.mxu0 0.0
    %426 = vmatpush1.msra.mxu0 0.0
    %427 = vmatprep.subr.mxu0 0.0
    %428 = vmatpush1.msra.mxu0 0.0
    %429 = vmatprep.subr.mxu0 0.0
    %430 = vmatpush1.msra.mxu0 0.0
    %431 = vmatprep.subr.mxu0 0.0
    %432 = vmatpush1.msra.mxu0 0.0
    %433 = vmatprep.subr.mxu0 0.0
    %434 = vmatpush1.msra.mxu0 0.0
    %435 = vmatprep.subr.mxu0 0.0
    %436 = vmatpush1.msra.mxu0 0.0
    %437 = vmatprep.subr.mxu0 0.0
    %438 = vmatpush1.msra.mxu0 0.0
    %439 = vmatprep.subr.mxu0 0.0
    %440 = vmatpush1.msra.mxu0 0.0
    %441 = vmatprep.subr.mxu0 0.0
    %442 = vmatpush1.msra.mxu0 0.0
    %443 = vmatprep.subr.mxu0 0.0
    %444 = vmatpush1.msra.mxu0 0.0
    %445 = vmatprep.subr.mxu0 0.0
    %446 = vmatpush1.msra.mxu0 0.0
    %447 = vmatprep.subr.mxu0 0.0
    %448 = vmatpush1.msra.mxu0 0.0
    %449 = vmatprep.subr.mxu0 0.0
    %450 = vmatpush1.msra.mxu0 0.0
    %451 = vmatprep.subr.mxu0 0.0
    %452 = vmatpush1.msra.mxu0 0.0
    %453 = vmatprep.subr.mxu0 0.0
    %454 = vmatpush1.msra.mxu0 0.0
    %455 = vmatprep.subr.mxu0 0.0
    %456 = vmatpush1.msra.mxu0 0.0
    %457 = vmatprep.subr.mxu0 0.0
    %458 = vmatpush1.msra.mxu0 0.0
    %459 = vmatprep.subr.mxu0 0.0
    %460 = vmatpush1.msra.mxu0 0.0
    %461 = vmatprep.subr.mxu0 0.0
    %462 = vmatpush1.msra.mxu0 0.0
    %463 = vmatprep.subr.mxu0 0.0
    %464 = vmatpush1.msra.mxu0 0.0
    %465 = vmatprep.subr.mxu0 0.0
    %466 = vmatpush1.msra.mxu0 0.0
    %467 = vmatprep.subr.mxu0 0.0
    %468 = vmatpush1.msra.mxu0 0.0
    %469 = vmatprep.subr.mxu0 0.0
    %470 = vmatpush1.msra.mxu0 0.0
    %471 = vmatprep.subr.mxu0 0.0
    %472 = vmatpush1.msra.mxu0 0.0
    %473 = vmatprep.subr.mxu0 0.0
    %474 = vmatpush1.msra.mxu0 0.0
    %475 = vmatprep.subr.mxu0 0.0
    %476 = vmatpush1.msra.mxu0 0.0
    %477 = vmatprep.mubr.f32.mxu0 0.0
    %478 = vmatmul.mubr.f32.gmra.mrb[0].mxu0 %v411
    %v479 = vpop.f32.mrb[0].mxu0
    %v480 = vadd.f32 0.0, %v479
    %v481 = vpop.f32.mrb[0].mxu0
    %482 = vdwg.mxu0
    %v483 = vadd.f32 %v409, %v480
    %v484 = vxor.u32 %v483, 2147483648
    %v485 = vmul.f32 %v484, 1.442695
    %v486 = vpow.pop %v485
    %v487 = vadd.f32 %v486, 1.0
    %v488 = vrcp.pop %v487
    %v489 = vmul.f32 1.0, %v488
    %v490 = vtanh.pop %v483
    %492 = vrot.lane.b32.xlu0 %v407, 32
    %v493 = vpop.permute.xlu0 %492
    %v495 = vmul.f32 %v489, %v493
    %497 = vrot.lane.b32.xlu0 %v490, 32
    %v498 = vpop.permute.xlu0 %497
    %v500 = vmul.f32 %v489, %v498
    %502 = vrot.lane.b32.xlu0 %v500, 32
    %v503 = vpop.permute.xlu0 %502
    %v505 = vadd.f32 %v495, %v503
    %v506 = vtanh.pop %v505
    %508 = vrot.lane.b32.xlu0 %v506, 32
    %v509 = vpop.permute.xlu0 %508
    %v511 = vmul.f32 %v489, %v509
    %v512 = vsel %vm290, 1, 14
    %vm513 = vcmp.gt.s32.totalorder %v394, %v512
    %515 = vrot.lane.b32.xlu0 %v511, 64
    %v516 = vpop.permute.xlu0 %515
    %v518 = vsel %vm513, %v516, 0.0
    %s519 = scalar_lea.vmem [#allocation9], 2
    %520 = vst.msk [vmem:[%s519] sm:$0x3] %vm401, %v518
    %v521 = vsel %vm513, %v516, %v400
    %523 = vrot.lane.b32.xlu0 %v505, 96
    %v524 = vpop.permute.xlu0 %523
    %v526 = vsel %vm513, %v524, %v407
    %s527 = scalar_lea.vmem [#allocation2], 4
    %v528 = vld [vmem:[%s527] sm:$0x3]
    %v530 = vsel %vm292, %v521, 0
    %532 = vmatprep.subr.mxu0 0.0
    %533 = vmatpush1.msra.mxu0 %v283
    %534 = vmatprep.subr.mxu0 0.0
    %535 = vmatpush1.msra.mxu0 %v284
    %536 = vmatprep.subr.mxu0 0.0
    %537 = vmatpush1.msra.mxu0 %v285
    %538 = vmatprep.subr.mxu0 0.0
    %539 = vmatpush1.msra.mxu0 %v286
    %540 = vmatprep.subr.mxu0 0.0
    %541 = vmatpush1.msra.mxu0 0.0
    %542 = vmatprep.subr.mxu0 0.0
    %543 = vmatpush1.msra.mxu0 0.0
    %544 = vmatprep.subr.mxu0 0.0
    %545 = vmatpush1.msra.mxu0 0.0
    %546 = vmatprep.subr.mxu0 0.0
    %547 = vmatpush1.msra.mxu0 0.0
    %548 = vmatprep.subr.mxu0 0.0
    %549 = vmatpush1.msra.mxu0 0.0
    %550 = vmatprep.subr.mxu0 0.0
    %551 = vmatpush1.msra.mxu0 0.0
    %552 = vmatprep.subr.mxu0 0.0
    %553 = vmatpush1.msra.mxu0 0.0
    %554 = vmatprep.subr.mxu0 0.0
    %555 = vmatpush1.msra.mxu0 0.0
    %556 = vmatprep.subr.mxu0 0.0
    %557 = vmatpush1.msra.mxu0 0.0
    %558 = vmatprep.subr.mxu0 0.0
    %559 = vmatpush1.msra.mxu0 0.0
    %560 = vmatprep.subr.mxu0 0.0
    %561 = vmatpush1.msra.mxu0 0.0
    %562 = vmatprep.subr.mxu0 0.0
    %563 = vmatpush1.msra.mxu0 0.0
    %564 = vmatprep.subr.mxu0 0.0
    %565 = vmatpush1.msra.mxu0 0.0
    %566 = vmatprep.subr.mxu0 0.0
    %567 = vmatpush1.msra.mxu0 0.0
    %568 = vmatprep.subr.mxu0 0.0
    %569 = vmatpush1.msra.mxu0 0.0
    %570 = vmatprep.subr.mxu0 0.0
    %571 = vmatpush1.msra.mxu0 0.0
    %572 = vmatprep.subr.mxu0 0.0
    %573 = vmatpush1.msra.mxu0 0.0
    %574 = vmatprep.subr.mxu0 0.0
    %575 = vmatpush1.msra.mxu0 0.0
    %576 = vmatprep.subr.mxu0 0.0
    %577 = vmatpush1.msra.mxu0 0.0
    %578 = vmatprep.subr.mxu0 0.0
    %579 = vmatpush1.msra.mxu0 0.0
    %580 = vmatprep.subr.mxu0 0.0
    %581 = vmatpush1.msra.mxu0 0.0
    %582 = vmatprep.subr.mxu0 0.0
    %583 = vmatpush1.msra.mxu0 0.0
    %584 = vmatprep.subr.mxu0 0.0
    %585 = vmatpush1.msra.mxu0 0.0
    %586 = vmatprep.subr.mxu0 0.0
    %587 = vmatpush1.msra.mxu0 0.0
    %588 = vmatprep.subr.mxu0 0.0
    %589 = vmatpush1.msra.mxu0 0.0
    %590 = vmatprep.subr.mxu0 0.0
    %591 = vmatpush1.msra.mxu0 0.0
    %592 = vmatprep.subr.mxu0 0.0
    %593 = vmatpush1.msra.mxu0 0.0
    %594 = vmatprep.subr.mxu0 0.0
    %595 = vmatpush1.msra.mxu0 0.0
    %596 = vmatprep.mubr.f32.mxu0 0.0
    %597 = vmatmul.mubr.f32.gmra.mrb[0].mxu0 %v530
    %v598 = vpop.f32.mrb[0].mxu0
    %v599 = vadd.f32 0.0, %v598
    %v600 = vpop.f32.mrb[0].mxu0
    %601 = vdwg.mxu0
    %v602 = vadd.f32 %v528, %v599
    %v603 = vxor.u32 %v602, 2147483648
    %v604 = vmul.f32 %v603, 1.442695
    %v605 = vpow.pop %v604
    %v606 = vadd.f32 %v605, 1.0
    %v607 = vrcp.pop %v606
    %v608 = vmul.f32 1.0, %v607
    %v609 = vtanh.pop %v602
    %611 = vrot.lane.b32.xlu0 %v526, 32
    %v612 = vpop.permute.xlu0 %611
    %v614 = vmul.f32 %v608, %v612
    %616 = vrot.lane.b32.xlu0 %v609, 32
    %v617 = vpop.permute.xlu0 %616
    %v619 = vmul.f32 %v608, %v617
    %621 = vrot.lane.b32.xlu0 %v619, 32
    %v622 = vpop.permute.xlu0 %621
    %v624 = vadd.f32 %v614, %v622
    %v625 = vtanh.pop %v624
    %627 = vrot.lane.b32.xlu0 %v625, 32
    %v628 = vpop.permute.xlu0 %627
    %v630 = vmul.f32 %v608, %v628
    %v631 = vsel %vm290, 2, 13
    %vm632 = vcmp.gt.s32.totalorder %v394, %v631
    %634 = vrot.lane.b32.xlu0 %v630, 64
    %v635 = vpop.permute.xlu0 %634
    %v637 = vsel %vm632, %v635, 0.0
    %s638 = scalar_lea.vmem [#allocation9], 4
    %639 = vst.msk [vmem:[%s638] sm:$0x3] %vm401, %v637
    %v640 = vsel %vm632, %v635, %v521
    %642 = vrot.lane.b32.xlu0 %v624, 96
    %v643 = vpop.permute.xlu0 %642
    %v645 = vsel %vm632, %v643, %v526
    %s646 = scalar_lea.vmem [#allocation2], 6
    %v647 = vld [vmem:[%s646] sm:$0x3]
    %v649 = vsel %vm292, %v640, 0
    %651 = vmatprep.subr.mxu0 0.0
    %652 = vmatpush1.msra.mxu0 %v283
    %653 = vmatprep.subr.mxu0 0.0
    %654 = vmatpush1.msra.mxu0 %v284
    %655 = vmatprep.subr.mxu0 0.0
    %656 = vmatpush1.msra.mxu0 %v285
    %657 = vmatprep.subr.mxu0 0.0
    %658 = vmatpush1.msra.mxu0 %v286
    %659 = vmatprep.subr.mxu0 0.0
    %660 = vmatpush1.msra.mxu0 0.0
    %661 = vmatprep.subr.mxu0 0.0
    %662 = vmatpush1.msra.mxu0 0.0
    %663 = vmatprep.subr.mxu0 0.0
    %664 = vmatpush1.msra.mxu0 0.0
    %665 = vmatprep.subr.mxu0 0.0
    %666 = vmatpush1.msra.mxu0 0.0
    %667 = vmatprep.subr.mxu0 0.0
    %668 = vmatpush1.msra.mxu0 0.0
    %669 = vmatprep.subr.mxu0 0.0
    %670 = vmatpush1.msra.mxu0 0.0
    %671 = vmatprep.subr.mxu0 0.0
    %672 = vmatpush1.msra.mxu0 0.0
    %673 = vmatprep.subr.mxu0 0.0
    %674 = vmatpush1.msra.mxu0 0.0
    %675 = vmatprep.subr.mxu0 0.0
    %676 = vmatpush1.msra.mxu0 0.0
    %677 = vmatprep.subr.mxu0 0.0
    %678 = vmatpush1.msra.mxu0 0.0
    %679 = vmatprep.subr.mxu0 0.0
    %680 = vmatpush1.msra.mxu0 0.0
    %681 = vmatprep.subr.mxu0 0.0
    %682 = vmatpush1.msra.mxu0 0.0
    %683 = vmatprep.subr.mxu0 0.0
    %684 = vmatpush1.msra.mxu0 0.0
    %685 = vmatprep.subr.mxu0 0.0
    %686 = vmatpush1.msra.mxu0 0.0
    %687 = vmatprep.subr.mxu0 0.0
    %688 = vmatpush1.msra.mxu0 0.0
    %689 = vmatprep.subr.mxu0 0.0
    %690 = vmatpush1.msra.mxu0 0.0
    %691 = vmatprep.subr.mxu0 0.0
    %692 = vmatpush1.msra.mxu0 0.0
    %693 = vmatprep.subr.mxu0 0.0
    %694 = vmatpush1.msra.mxu0 0.0
    %695 = vmatprep.subr.mxu0 0.0
    %696 = vmatpush1.msra.mxu0 0.0
    %697 = vmatprep.subr.mxu0 0.0
    %698 = vmatpush1.msra.mxu0 0.0
    %699 = vmatprep.subr.mxu0 0.0
    %700 = vmatpush1.msra.mxu0 0.0
    %701 = vmatprep.subr.mxu0 0.0
    %702 = vmatpush1.msra.mxu0 0.0
    %703 = vmatprep.subr.mxu0 0.0
    %704 = vmatpush1.msra.mxu0 0.0
    %705 = vmatprep.subr.mxu0 0.0
    %706 = vmatpush1.msra.mxu0 0.0
    %707 = vmatprep.subr.mxu0 0.0
    %708 = vmatpush1.msra.mxu0 0.0
    %709 = vmatprep.subr.mxu0 0.0
    %710 = vmatpush1.msra.mxu0 0.0
    %711 = vmatprep.subr.mxu0 0.0
    %712 = vmatpush1.msra.mxu0 0.0
    %713 = vmatprep.subr.mxu0 0.0
    %714 = vmatpush1.msra.mxu0 0.0
    %715 = vmatprep.mubr.f32.mxu0 0.0
    %716 = vmatmul.mubr.f32.gmra.mrb[0].mxu0 %v649
    %v717 = vpop.f32.mrb[0].mxu0
    %v718 = vadd.f32 0.0, %v717
    %v719 = vpop.f32.mrb[0].mxu0
    %720 = vdwg.mxu0
    %v721 = vadd.f32 %v647, %v718
    %v722 = vxor.u32 %v721, 2147483648
    %v723 = vmul.f32 %v722, 1.442695
    %v724 = vpow.pop %v723
    %v725 = vadd.f32 %v724, 1.0
    %v726 = vrcp.pop %v725
    %v727 = vmul.f32 1.0, %v726
    %v728 = vtanh.pop %v721
    %730 = vrot.lane.b32.xlu0 %v645, 32
    %v731 = vpop.permute.xlu0 %730
    %v733 = vmul.f32 %v727, %v731
    %735 = vrot.lane.b32.xlu0 %v728, 32
    %v736 = vpop.permute.xlu0 %735
    %v738 = vmul.f32 %v727, %v736
    %740 = vrot.lane.b32.xlu0 %v738, 32
    %v741 = vpop.permute.xlu0 %740
    %v743 = vadd.f32 %v733, %v741
    %v744 = vtanh.pop %v743
    %746 = vrot.lane.b32.xlu0 %v744, 32
    %v747 = vpop.permute.xlu0 %746
    %v749 = vmul.f32 %v727, %v747
    %v750 = vsel %vm290, 3, 12
    %vm751 = vcmp.gt.s32.totalorder %v394, %v750
    %753 = vrot.lane.b32.xlu0 %v749, 64
    %v754 = vpop.permute.xlu0 %753
    %v756 = vsel %vm751, %v754, 0.0
    %s757 = scalar_lea.vmem [#allocation9], 6
    %758 = vst.msk [vmem:[%s757] sm:$0x3] %vm401, %v756
    %v759 = vsel %vm751, %v754, %v640
    %761 = vrot.lane.b32.xlu0 %v743, 96
    %v762 = vpop.permute.xlu0 %761
    %v764 = vsel %vm751, %v762, %v645
    %s765 = scalar_lea.vmem [#allocation2], 8
    %v766 = vld [vmem:[%s765] sm:$0x3]
    %v768 = vsel %vm292, %v759, 0
    %770 = vmatprep.subr.mxu0 0.0
    %771 = vmatpush1.msra.mxu0 %v283
    %772 = vmatprep.subr.mxu0 0.0
    %773 = vmatpush1.msra.mxu0 %v284
    %774 = vmatprep.subr.mxu0 0.0
    %775 = vmatpush1.msra.mxu0 %v285
    %776 = vmatprep.subr.mxu0 0.0
    %777 = vmatpush1.msra.mxu0 %v286
    %778 = vmatprep.subr.mxu0 0.0
    %779 = vmatpush1.msra.mxu0 0.0
    %780 = vmatprep.subr.mxu0 0.0
    %781 = vmatpush1.msra.mxu0 0.0
    %782 = vmatprep.subr.mxu0 0.0
    %783 = vmatpush1.msra.mxu0 0.0
    %784 = vmatprep.subr.mxu0 0.0
    %785 = vmatpush1.msra.mxu0 0.0
    %786 = vmatprep.subr.mxu0 0.0
    %787 = vmatpush1.msra.mxu0 0.0
    %788 = vmatprep.subr.mxu0 0.0
    %789 = vmatpush1.msra.mxu0 0.0
    %790 = vmatprep.subr.mxu0 0.0
    %791 = vmatpush1.msra.mxu0 0.0
    %792 = vmatprep.subr.mxu0 0.0
    %793 = vmatpush1.msra.mxu0 0.0
    %794 = vmatprep.subr.mxu0 0.0
    %795 = vmatpush1.msra.mxu0 0.0
    %796 = vmatprep.subr.mxu0 0.0
    %797 = vmatpush1.msra.mxu0 0.0
    %798 = vmatprep.subr.mxu0 0.0
    %799 = vmatpush1.msra.mxu0 0.0
    %800 = vmatprep.subr.mxu0 0.0
    %801 = vmatpush1.msra.mxu0 0.0
    %802 = vmatprep.subr.mxu0 0.0
    %803 = vmatpush1.msra.mxu0 0.0
    %804 = vmatprep.subr.mxu0 0.0
    %805 = vmatpush1.msra.mxu0 0.0
    %806 = vmatprep.subr.mxu0 0.0
    %807 = vmatpush1.msra.mxu0 0.0
    %808 = vmatprep.subr.mxu0 0.0
    %809 = vmatpush1.msra.mxu0 0.0
    %810 = vmatprep.subr.mxu0 0.0
    %811 = vmatpush1.msra.mxu0 0.0
    %812 = vmatprep.subr.mxu0 0.0
    %813 = vmatpush1.msra.mxu0 0.0
    %814 = vmatprep.subr.mxu0 0.0
    %815 = vmatpush1.msra.mxu0 0.0
    %816 = vmatprep.subr.mxu0 0.0
    %817 = vmatpush1.msra.mxu0 0.0
    %818 = vmatprep.subr.mxu0 0.0
    %819 = vmatpush1.msra.mxu0 0.0
    %820 = vmatprep.subr.mxu0 0.0
    %821 = vmatpush1.msra.mxu0 0.0
    %822 = vmatprep.subr.mxu0 0.0
    %823 = vmatpush1.msra.mxu0 0.0
    %824 = vmatprep.subr.mxu0 0.0
    %825 = vmatpush1.msra.mxu0 0.0
    %826 = vmatprep.subr.mxu0 0.0
    %827 = vmatpush1.msra.mxu0 0.0
    %828 = vmatprep.subr.mxu0 0.0
    %829 = vmatpush1.msra.mxu0 0.0
    %830 = vmatprep.subr.mxu0 0.0
    %831 = vmatpush1.msra.mxu0 0.0
    %832 = vmatprep.subr.mxu0 0.0
    %833 = vmatpush1.msra.mxu0 0.0
    %834 = vmatprep.mubr.f32.mxu0 0.0
    %835 = vmatmul.mubr.f32.gmra.mrb[0].mxu0 %v768
    %v836 = vpop.f32.mrb[0].mxu0
    %v837 = vadd.f32 0.0, %v836
    %v838 = vpop.f32.mrb[0].mxu0
    %839 = vdwg.mxu0
    %v840 = vadd.f32 %v766, %v837
    %v841 = vxor.u32 %v840, 2147483648
    %v842 = vmul.f32 %v841, 1.442695
    %v843 = vpow.pop %v842
    %v844 = vadd.f32 %v843, 1.0
    %v845 = vrcp.pop %v844
    %v846 = vmul.f32 1.0, %v845
    %v847 = vtanh.pop %v840
    %849 = vrot.lane.b32.xlu0 %v764, 32
    %v850 = vpop.permute.xlu0 %849
    %v852 = vmul.f32 %v846, %v850
    %854 = vrot.lane.b32.xlu0 %v847, 32
    %v855 = vpop.permute.xlu0 %854
    %v857 = vmul.f32 %v846, %v855
    %859 = vrot.lane.b32.xlu0 %v857, 32
    %v860 = vpop.permute.xlu0 %859
    %v862 = vadd.f32 %v852, %v860
    %v863 = vtanh.pop %v862
    %865 = vrot.lane.b32.xlu0 %v863, 32
    %v866 = vpop.permute.xlu0 %865
    %v868 = vmul.f32 %v846, %v866
    %v869 = vsel %vm290, 4, 11
    %vm870 = vcmp.gt.s32.totalorder %v394, %v869
    %872 = vrot.lane.b32.xlu0 %v868, 64
    %v873 = vpop.permute.xlu0 %872
    %v875 = vsel %vm870, %v873, 0.0
    %s876 = scalar_lea.vmem [#allocation9], 8
    %877 = vst.msk [vmem:[%s876] sm:$0x3] %vm401, %v875
    %v878 = vsel %vm870, %v873, %v759
    %880 = vrot.lane.b32.xlu0 %v862, 96
    %v881 = vpop.permute.xlu0 %880
    %v883 = vsel %vm870, %v881, %v764
    %s884 = scalar_lea.vmem [#allocation2], 10
    %v885 = vld [vmem:[%s884] sm:$0x3]
    %v887 = vsel %vm292, %v878, 0
    %889 = vmatprep.subr.mxu0 0.0
    %890 = vmatpush1.msra.mxu0 %v283
    %891 = vmatprep.subr.mxu0 0.0
    %892 = vmatpush1.msra.mxu0 %v284
    %893 = vmatprep.subr.mxu0 0.0
    %894 = vmatpush1.msra.mxu0 %v285
    %895 = vmatprep.subr.mxu0 0.0
    %896 = vmatpush1.msra.mxu0 %v286
    %897 = vmatprep.subr.mxu0 0.0
    %898 = vmatpush1.msra.mxu0 0.0
    %899 = vmatprep.subr.mxu0 0.0
    %900 = vmatpush1.msra.mxu0 0.0
    %901 = vmatprep.subr.mxu0 0.0
    %902 = vmatpush1.msra.mxu0 0.0
    %903 = vmatprep.subr.mxu0 0.0
    %904 = vmatpush1.msra.mxu0 0.0
    %905 = vmatprep.subr.mxu0 0.0
    %906 = vmatpush1.msra.mxu0 0.0
    %907 = vmatprep.subr.mxu0 0.0
    %908 = vmatpush1.msra.mxu0 0.0
    %909 = vmatprep.subr.mxu0 0.0
    %910 = vmatpush1.msra.mxu0 0.0
    %911 = vmatprep.subr.mxu0 0.0
    %912 = vmatpush1.msra.mxu0 0.0
    %913 = vmatprep.subr.mxu0 0.0
    %914 = vmatpush1.msra.mxu0 0.0
    %915 = vmatprep.subr.mxu0 0.0
    %916 = vmatpush1.msra.mxu0 0.0
    %917 = vmatprep.subr.mxu0 0.0
    %918 = vmatpush1.msra.mxu0 0.0
    %919 = vmatprep.subr.mxu0 0.0
    %920 = vmatpush1.msra.mxu0 0.0
    %921 = vmatprep.subr.mxu0 0.0
    %922 = vmatpush1.msra.mxu0 0.0
    %923 = vmatprep.subr.mxu0 0.0
    %924 = vmatpush1.msra.mxu0 0.0
    %925 = vmatprep.subr.mxu0 0.0
    %926 = vmatpush1.msra.mxu0 0.0
    %927 = vmatprep.subr.mxu0 0.0
    %928 = vmatpush1.msra.mxu0 0.0
    %929 = vmatprep.subr.mxu0 0.0
    %930 = vmatpush1.msra.mxu0 0.0
    %931 = vmatprep.subr.mxu0 0.0
    %932 = vmatpush1.msra.mxu0 0.0
    %933 = vmatprep.subr.mxu0 0.0
    %934 = vmatpush1.msra.mxu0 0.0
    %935 = vmatprep.subr.mxu0 0.0
    %936 = vmatpush1.msra.mxu0 0.0
    %937 = vmatprep.subr.mxu0 0.0
    %938 = vmatpush1.msra.mxu0 0.0
    %939 = vmatprep.subr.mxu0 0.0
    %940 = vmatpush1.msra.mxu0 0.0
    %941 = vmatprep.subr.mxu0 0.0
    %942 = vmatpush1.msra.mxu0 0.0
    %943 = vmatprep.subr.mxu0 0.0
    %944 = vmatpush1.msra.mxu0 0.0
    %945 = vmatprep.subr.mxu0 0.0
    %946 = vmatpush1.msra.mxu0 0.0
    %947 = vmatprep.subr.mxu0 0.0
    %948 = vmatpush1.msra.mxu0 0.0
    %949 = vmatprep.subr.mxu0 0.0
    %950 = vmatpush1.msra.mxu0 0.0
    %951 = vmatprep.subr.mxu0 0.0
    %952 = vmatpush1.msra.mxu0 0.0
    %953 = vmatprep.mubr.f32.mxu0 0.0
    %954 = vmatmul.mubr.f32.gmra.mrb[0].mxu0 %v887
    %v955 = vpop.f32.mrb[0].mxu0
    %v956 = vadd.f32 0.0, %v955
    %v957 = vpop.f32.mrb[0].mxu0
    %958 = vdwg.mxu0
    %v959 = vadd.f32 %v885, %v956
    %v960 = vxor.u32 %v959, 2147483648
    %v961 = vmul.f32 %v960, 1.442695
    %v962 = vpow.pop %v961
    %v963 = vadd.f32 %v962, 1.0
    %v964 = vrcp.pop %v963
    %v965 = vmul.f32 1.0, %v964
    %v966 = vtanh.pop %v959
    %968 = vrot.lane.b32.xlu0 %v883, 32
    %v969 = vpop.permute.xlu0 %968
    %v971 = vmul.f32 %v965, %v969
    %973 = vrot.lane.b32.xlu0 %v966, 32
    %v974 = vpop.permute.xlu0 %973
    %v976 = vmul.f32 %v965, %v974
    %978 = vrot.lane.b32.xlu0 %v976, 32
    %v979 = vpop.permute.xlu0 %978
    %v981 = vadd.f32 %v971, %v979
    %v982 = vtanh.pop %v981
    %984 = vrot.lane.b32.xlu0 %v982, 32
    %v985 = vpop.permute.xlu0 %984
    %v987 = vmul.f32 %v965, %v985
    %v988 = vsel %vm290, 5, 10
    %vm989 = vcmp.gt.s32.totalorder %v394, %v988
    %991 = vrot.lane.b32.xlu0 %v987, 64
    %v992 = vpop.permute.xlu0 %991
    %v994 = vsel %vm989, %v992, 0.0
    %s995 = scalar_lea.vmem [#allocation9], 10
    %996 = vst.msk [vmem:[%s995] sm:$0x3] %vm401, %v994
    %v997 = vsel %vm989, %v992, %v878
    %999 = vrot.lane.b32.xlu0 %v981, 96
    %v1000 = vpop.permute.xlu0 %999
    %v1002 = vsel %vm989, %v1000, %v883
    %s1003 = scalar_lea.vmem [#allocation2], 12
    %v1004 = vld [vmem:[%s1003] sm:$0x3]
    %v1006 = vsel %vm292, %v997, 0
    %1008 = vmatprep.subr.mxu0 0.0
    %1009 = vmatpush1.msra.mxu0 %v283
    %1010 = vmatprep.subr.mxu0 0.0
    %1011 = vmatpush1.msra.mxu0 %v284
    %1012 = vmatprep.subr.mxu0 0.0
    %1013 = vmatpush1.msra.mxu0 %v285
    %1014 = vmatprep.subr.mxu0 0.0
    %1015 = vmatpush1.msra.mxu0 %v286
    %1016 = vmatprep.subr.mxu0 0.0
    %1017 = vmatpush1.msra.mxu0 0.0
    %1018 = vmatprep.subr.mxu0 0.0
    %1019 = vmatpush1.msra.mxu0 0.0
    %1020 = vmatprep.subr.mxu0 0.0
    %1021 = vmatpush1.msra.mxu0 0.0
    %1022 = vmatprep.subr.mxu0 0.0
    %1023 = vmatpush1.msra.mxu0 0.0
    %1024 = vmatprep.subr.mxu0 0.0
    %1025 = vmatpush1.msra.mxu0 0.0
    %1026 = vmatprep.subr.mxu0 0.0
    %1027 = vmatpush1.msra.mxu0 0.0
    %1028 = vmatprep.subr.mxu0 0.0
    %1029 = vmatpush1.msra.mxu0 0.0
    %1030 = vmatprep.subr.mxu0 0.0
    %1031 = vmatpush1.msra.mxu0 0.0
    %1032 = vmatprep.subr.mxu0 0.0
    %1033 = vmatpush1.msra.mxu0 0.0
    %1034 = vmatprep.subr.mxu0 0.0
    %1035 = vmatpush1.msra.mxu0 0.0
    %1036 = vmatprep.subr.mxu0 0.0
    %1037 = vmatpush1.msra.mxu0 0.0
    %1038 = vmatprep.subr.mxu0 0.0
    %1039 = vmatpush1.msra.mxu0 0.0
    %1040 = vmatprep.subr.mxu0 0.0
    %1041 = vmatpush1.msra.mxu0 0.0
    %1042 = vmatprep.subr.mxu0 0.0
    %1043 = vmatpush1.msra.mxu0 0.0
    %1044 = vmatprep.subr.mxu0 0.0
    %1045 = vmatpush1.msra.mxu0 0.0
    %1046 = vmatprep.subr.mxu0 0.0
    %1047 = vmatpush1.msra.mxu0 0.0
    %1048 = vmatprep.subr.mxu0 0.0
    %1049 = vmatpush1.msra.mxu0 0.0
    %1050 = vmatprep.subr.mxu0 0.0
    %1051 = vmatpush1.msra.mxu0 0.0
    %1052 = vmatprep.subr.mxu0 0.0
    %1053 = vmatpush1.msra.mxu0 0.0
    %1054 = vmatprep.subr.mxu0 0.0
    %1055 = vmatpush1.msra.mxu0 0.0
    %1056 = vmatprep.subr.mxu0 0.0
    %1057 = vmatpush1.msra.mxu0 0.0
    %1058 = vmatprep.subr.mxu0 0.0
    %1059 = vmatpush1.msra.mxu0 0.0
    %1060 = vmatprep.subr.mxu0 0.0
    %1061 = vmatpush1.msra.mxu0 0.0
    %1062 = vmatprep.subr.mxu0 0.0
    %1063 = vmatpush1.msra.mxu0 0.0
    %1064 = vmatprep.subr.mxu0 0.0
    %1065 = vmatpush1.msra.mxu0 0.0
    %1066 = vmatprep.subr.mxu0 0.0
    %1067 = vmatpush1.msra.mxu0 0.0
    %1068 = vmatprep.subr.mxu0 0.0
    %1069 = vmatpush1.msra.mxu0 0.0
    %1070 = vmatprep.subr.mxu0 0.0
    %1071 = vmatpush1.msra.mxu0 0.0
    %1072 = vmatprep.mubr.f32.mxu0 0.0
    %1073 = vmatmul.mubr.f32.gmra.mrb[0].mxu0 %v1006
    %v1074 = vpop.f32.mrb[0].mxu0
    %v1075 = vadd.f32 0.0, %v1074
    %v1076 = vpop.f32.mrb[0].mxu0
    %1077 = vdwg.mxu0
    %v1078 = vadd.f32 %v1004, %v1075
    %v1079 = vxor.u32 %v1078, 2147483648
    %v1080 = vmul.f32 %v1079, 1.442695
    %v1081 = vpow.pop %v1080
    %v1082 = vadd.f32 %v1081, 1.0
    %v1083 = vrcp.pop %v1082
    %v1084 = vmul.f32 1.0, %v1083
    %v1085 = vtanh.pop %v1078
    %1087 = vrot.lane.b32.xlu0 %v1002, 32
    %v1088 = vpop.permute.xlu0 %1087
    %v1090 = vmul.f32 %v1084, %v1088
    %1092 = vrot.lane.b32.xlu0 %v1085, 32
    %v1093 = vpop.permute.xlu0 %1092
    %v1095 = vmul.f32 %v1084, %v1093
    %1097 = vrot.lane.b32.xlu0 %v1095, 32
    %v1098 = vpop.permute.xlu0 %1097
    %v1100 = vadd.f32 %v1090, %v1098
    %v1101 = vtanh.pop %v1100
    %1103 = vrot.lane.b32.xlu0 %v1101, 32
    %v1104 = vpop.permute.xlu0 %1103
    %v1106 = vmul.f32 %v1084, %v1104
    %v1107 = vsel %vm290, 6, 9
    %vm1108 = vcmp.gt.s32.totalorder %v394, %v1107
    %1110 = vrot.lane.b32.xlu0 %v1106, 64
    %v1111 = vpop.permute.xlu0 %1110
    %v1113 = vsel %vm1108, %v1111, 0.0
    %s1114 = scalar_lea.vmem [#allocation9], 12
    %1115 = vst.msk [vmem:[%s1114] sm:$0x3] %vm401, %v1113
    %v1116 = vsel %vm1108, %v1111, %v997
    %1118 = vrot.lane.b32.xlu0 %v1100, 96
    %v1119 = vpop.permute.xlu0 %1118
    %v1121 = vsel %vm1108, %v1119, %v1002
    %s1122 = scalar_lea.vmem [#allocation2], 14
    %v1123 = vld [vmem:[%s1122] sm:$0x3]
    %v1125 = vsel %vm292, %v1116, 0
    %1127 = vmatprep.subr.mxu0 0.0
    %1128 = vmatpush1.msra.mxu0 %v283
    %1129 = vmatprep.subr.mxu0 0.0
    %1130 = vmatpush1.msra.mxu0 %v284
    %1131 = vmatprep.subr.mxu0 0.0
    %1132 = vmatpush1.msra.mxu0 %v285
    %1133 = vmatprep.subr.mxu0 0.0
    %1134 = vmatpush1.msra.mxu0 %v286
    %1135 = vmatprep.subr.mxu0 0.0
    %1136 = vmatpush1.msra.mxu0 0.0
    %1137 = vmatprep.subr.mxu0 0.0
    %1138 = vmatpush1.msra.mxu0 0.0
    %1139 = vmatprep.subr.mxu0 0.0
    %1140 = vmatpush1.msra.mxu0 0.0
    %1141 = vmatprep.subr.mxu0 0.0
    %1142 = vmatpush1.msra.mxu0 0.0
    %1143 = vmatprep.subr.mxu0 0.0
    %1144 = vmatpush1.msra.mxu0 0.0
    %1145 = vmatprep.subr.mxu0 0.0
    %1146 = vmatpush1.msra.mxu0 0.0
    %1147 = vmatprep.subr.mxu0 0.0
    %1148 = vmatpush1.msra.mxu0 0.0
    %1149 = vmatprep.subr.mxu0 0.0
    %1150 = vmatpush1.msra.mxu0 0.0
    %1151 = vmatprep.subr.mxu0 0.0
    %1152 = vmatpush1.msra.mxu0 0.0
    %1153 = vmatprep.subr.mxu0 0.0
    %1154 = vmatpush1.msra.mxu0 0.0
    %1155 = vmatprep.subr.mxu0 0.0
    %1156 = vmatpush1.msra.mxu0 0.0
    %1157 = vmatprep.subr.mxu0 0.0
    %1158 = vmatpush1.msra.mxu0 0.0
    %1159 = vmatprep.subr.mxu0 0.0
    %1160 = vmatpush1.msra.mxu0 0.0
    %1161 = vmatprep.subr.mxu0 0.0
    %1162 = vmatpush1.msra.mxu0 0.0
    %1163 = vmatprep.subr.mxu0 0.0
    %1164 = vmatpush1.msra.mxu0 0.0
    %1165 = vmatprep.subr.mxu0 0.0
    %1166 = vmatpush1.msra.mxu0 0.0
    %1167 = vmatprep.subr.mxu0 0.0
    %1168 = vmatpush1.msra.mxu0 0.0
    %1169 = vmatprep.subr.mxu0 0.0
    %1170 = vmatpush1.msra.mxu0 0.0
    %1171 = vmatprep.subr.mxu0 0.0
    %1172 = vmatpush1.msra.mxu0 0.0
    %1173 = vmatprep.subr.mxu0 0.0
    %1174 = vmatpush1.msra.mxu0 0.0
    %1175 = vmatprep.subr.mxu0 0.0
    %1176 = vmatpush1.msra.mxu0 0.0
    %1177 = vmatprep.subr.mxu0 0.0
    %1178 = vmatpush1.msra.mxu0 0.0
    %1179 = vmatprep.subr.mxu0 0.0
    %1180 = vmatpush1.msra.mxu0 0.0
    %1181 = vmatprep.subr.mxu0 0.0
    %1182 = vmatpush1.msra.mxu0 0.0
    %1183 = vmatprep.subr.mxu0 0.0
    %1184 = vmatpush1.msra.mxu0 0.0
    %1185 = vmatprep.subr.mxu0 0.0
    %1186 = vmatpush1.msra.mxu0 0.0
    %1187 = vmatprep.subr.mxu0 0.0
    %1188 = vmatpush1.msra.mxu0 0.0
    %1189 = vmatprep.subr.mxu0 0.0
    %1190 = vmatpush1.msra.mxu0 0.0
    %1191 = vmatprep.mubr.f32.mxu0 0.0
    %1192 = vmatmul.mubr.f32.gmra.mrb[0].mxu0 %v1125
    %v1193 = vpop.f32.mrb[0].mxu0
    %v1194 = vadd.f32 0.0, %v1193
    %v1195 = vpop.f32.mrb[0].mxu0
    %1196 = vdwg.mxu0
    %v1197 = vadd.f32 %v1123, %v1194
    %v1198 = vxor.u32 %v1197, 2147483648
    %v1199 = vmul.f32 %v1198, 1.442695
    %v1200 = vpow.pop %v1199
    %v1201 = vadd.f32 %v1200, 1.0
    %v1202 = vrcp.pop %v1201
    %v1203 = vmul.f32 1.0, %v1202
    %v1204 = vtanh.pop %v1197
    %1206 = vrot.lane.b32.xlu0 %v1121, 32
    %v1207 = vpop.permute.xlu0 %1206
    %v1209 = vmul.f32 %v1203, %v1207
    %1211 = vrot.lane.b32.xlu0 %v1204, 32
    %v1212 = vpop.permute.xlu0 %1211
    %v1214 = vmul.f32 %v1203, %v1212
    %1216 = vrot.lane.b32.xlu0 %v1214, 32
    %v1217 = vpop.permute.xlu0 %1216
    %v1219 = vadd.f32 %v1209, %v1217
    %v1220 = vtanh.pop %v1219
    %1222 = vrot.lane.b32.xlu0 %v1220, 32
    %v1223 = vpop.permute.xlu0 %1222
    %v1225 = vmul.f32 %v1203, %v1223
    %v1226 = vsel %vm290, 7, 8
    %vm1227 = vcmp.gt.s32.totalorder %v394, %v1226
    %1229 = vrot.lane.b32.xlu0 %v1225, 64
    %v1230 = vpop.permute.xlu0 %1229
    %v1232 = vsel %vm1227, %v1230, 0.0
    %s1233 = scalar_lea.vmem [#allocation9], 14
    %1234 = vst.msk [vmem:[%s1233] sm:$0x3] %vm401, %v1232
    %v1235 = vsel %vm1227, %v1230, %v1116
    %1237 = vrot.lane.b32.xlu0 %v1219, 96
    %v1238 = vpop.permute.xlu0 %1237
    %v1240 = vsel %vm1227, %v1238, %v1121
    %s1241 = scalar_lea.vmem [#allocation2], 16
    %v1242 = vld [vmem:[%s1241] sm:$0x3]
    %v1244 = vsel %vm292, %v1235, 0
    %1246 = vmatprep.subr.mxu0 0.0
    %1247 = vmatpush1.msra.mxu0 %v283
    %1248 = vmatprep.subr.mxu0 0.0
    %1249 = vmatpush1.msra.mxu0 %v284
    %1250 = vmatprep.subr.mxu0 0.0
    %1251 = vmatpush1.msra.mxu0 %v285
    %1252 = vmatprep.subr.mxu0 0.0
    %1253 = vmatpush1.msra.mxu0 %v286
    %1254 = vmatprep.subr.mxu0 0.0
    %1255 = vmatpush1.msra.mxu0 0.0
    %1256 = vmatprep.subr.mxu0 0.0
    %1257 = vmatpush1.msra.mxu0 0.0
    %1258 = vmatprep.subr.mxu0 0.0
    %1259 = vmatpush1.msra.mxu0 0.0
    %1260 = vmatprep.subr.mxu0 0.0
    %1261 = vmatpush1.msra.mxu0 0.0
    %1262 = vmatprep.subr.mxu0 0.0
    %1263 = vmatpush1.msra.mxu0 0.0
    %1264 = vmatprep.subr.mxu0 0.0
    %1265 = vmatpush1.msra.mxu0 0.0
    %1266 = vmatprep.subr.mxu0 0.0
    %1267 = vmatpush1.msra.mxu0 0.0
    %1268 = vmatprep.subr.mxu0 0.0
    %1269 = vmatpush1.msra.mxu0 0.0
    %1270 = vmatprep.subr.mxu0 0.0
    %1271 = vmatpush1.msra.mxu0 0.0
    %1272 = vmatprep.subr.mxu0 0.0
    %1273 = vmatpush1.msra.mxu0 0.0
    %1274 = vmatprep.subr.mxu0 0.0
    %1275 = vmatpush1.msra.mxu0 0.0
    %1276 = vmatprep.subr.mxu0 0.0
    %1277 = vmatpush1.msra.mxu0 0.0
    %1278 = vmatprep.subr.mxu0 0.0
    %1279 = vmatpush1.msra.mxu0 0.0
    %1280 = vmatprep.subr.mxu0 0.0
    %1281 = vmatpush1.msra.mxu0 0.0
    %1282 = vmatprep.subr.mxu0 0.0
    %1283 = vmatpush1.msra.mxu0 0.0
    %1284 = vmatprep.subr.mxu0 0.0
    %1285 = vmatpush1.msra.mxu0 0.0
    %1286 = vmatprep.subr.mxu0 0.0
    %1287 = vmatpush1.msra.mxu0 0.0
    %1288 = vmatprep.subr.mxu0 0.0
    %1289 = vmatpush1.msra.mxu0 0.0
    %1290 = vmatprep.subr.mxu0 0.0
    %1291 = vmatpush1.msra.mxu0 0.0
    %1292 = vmatprep.subr.mxu0 0.0
    %1293 = vmatpush1.msra.mxu0 0.0
    %1294 = vmatprep.subr.mxu0 0.0
    %1295 = vmatpush1.msra.mxu0 0.0
    %1296 = vmatprep.subr.mxu0 0.0
    %1297 = vmatpush1.msra.mxu0 0.0
    %1298 = vmatprep.subr.mxu0 0.0
    %1299 = vmatpush1.msra.mxu0 0.0
    %1300 = vmatprep.subr.mxu0 0.0
    %1301 = vmatpush1.msra.mxu0 0.0
    %1302 = vmatprep.subr.mxu0 0.0
    %1303 = vmatpush1.msra.mxu0 0.0
    %1304 = vmatprep.subr.mxu0 0.0
    %1305 = vmatpush1.msra.mxu0 0.0
    %1306 = vmatprep.subr.mxu0 0.0
    %1307 = vmatpush1.msra.mxu0 0.0
    %1308 = vmatprep.subr.mxu0 0.0
    %1309 = vmatpush1.msra.mxu0 0.0
    %1310 = vmatprep.mubr.f32.mxu0 0.0
    %1311 = vmatmul.mubr.f32.gmra.mrb[0].mxu0 %v1244
    %v1312 = vpop.f32.mrb[0].mxu0
    %v1313 = vadd.f32 0.0, %v1312
    %v1314 = vpop.f32.mrb[0].mxu0
    %1315 = vdwg.mxu0
    %v1316 = vadd.f32 %v1242, %v1313
    %v1317 = vxor.u32 %v1316, 2147483648
    %v1318 = vmul.f32 %v1317, 1.442695
    %v1319 = vpow.pop %v1318
    %v1320 = vadd.f32 %v1319, 1.0
    %v1321 = vrcp.pop %v1320
    %v1322 = vmul.f32 1.0, %v1321
    %v1323 = vtanh.pop %v1316
    %1325 = vrot.lane.b32.xlu0 %v1240, 32
    %v1326 = vpop.permute.xlu0 %1325
    %v1328 = vmul.f32 %v1322, %v1326
    %1330 = vrot.lane.b32.xlu0 %v1323, 32
    %v1331 = vpop.permute.xlu0 %1330
    %v1333 = vmul.f32 %v1322, %v1331
    %1335 = vrot.lane.b32.xlu0 %v1333, 32
    %v1336 = vpop.permute.xlu0 %1335
    %v1338 = vadd.f32 %v1328, %v1336
    %v1339 = vtanh.pop %v1338
    %1341 = vrot.lane.b32.xlu0 %v1339, 32
    %v1342 = vpop.permute.xlu0 %1341
    %v1344 = vmul.f32 %v1322, %v1342
    %v1345 = vsel %vm290, 8, 7
    %vm1346 = vcmp.gt.s32.totalorder %v394, %v1345
    %1348 = vrot.lane.b32.xlu0 %v1344, 64
    %v1349 = vpop.permute.xlu0 %1348
    %v1351 = vsel %vm1346, %v1349, 0.0
    %s1352 = scalar_lea.vmem [#allocation9], 16
    %1353 = vst.msk [vmem:[%s1352] sm:$0x3] %vm401, %v1351
    %v1354 = vsel %vm1346, %v1349, %v1235
    %1356 = vrot.lane.b32.xlu0 %v1338, 96
    %v1357 = vpop.permute.xlu0 %1356
    %v1359 = vsel %vm1346, %v1357, %v1240
    %s1360 = scalar_lea.vmem [#allocation2], 18
    %v1361 = vld [vmem:[%s1360] sm:$0x3]
    %v1363 = vsel %vm292, %v1354, 0
    %1365 = vmatprep.subr.mxu0 0.0
    %1366 = vmatpush1.msra.mxu0 %v283
    %1367 = vmatprep.subr.mxu0 0.0
    %1368 = vmatpush1.msra.mxu0 %v284
    %1369 = vmatprep.subr.mxu0 0.0
    %1370 = vmatpush1.msra.mxu0 %v285
    %1371 = vmatprep.subr.mxu0 0.0
    %1372 = vmatpush1.msra.mxu0 %v286
    %1373 = vmatprep.subr.mxu0 0.0
    %1374 = vmatpush1.msra.mxu0 0.0
    %1375 = vmatprep.subr.mxu0 0.0
    %1376 = vmatpush1.msra.mxu0 0.0
    %1377 = vmatprep.subr.mxu0 0.0
    %1378 = vmatpush1.msra.mxu0 0.0
    %1379 = vmatprep.subr.mxu0 0.0
    %1380 = vmatpush1.msra.mxu0 0.0
    %1381 = vmatprep.subr.mxu0 0.0
    %1382 = vmatpush1.msra.mxu0 0.0
    %1383 = vmatprep.subr.mxu0 0.0
    %1384 = vmatpush1.msra.mxu0 0.0
    %1385 = vmatprep.subr.mxu0 0.0
    %1386 = vmatpush1.msra.mxu0 0.0
    %1387 = vmatprep.subr.mxu0 0.0
    %1388 = vmatpush1.msra.mxu0 0.0
    %1389 = vmatprep.subr.mxu0 0.0
    %1390 = vmatpush1.msra.mxu0 0.0
    %1391 = vmatprep.subr.mxu0 0.0
    %1392 = vmatpush1.msra.mxu0 0.0
    %1393 = vmatprep.subr.mxu0 0.0
    %1394 = vmatpush1.msra.mxu0 0.0
    %1395 = vmatprep.subr.mxu0 0.0
    %1396 = vmatpush1.msra.mxu0 0.0
    %1397 = vmatprep.subr.mxu0 0.0
    %1398 = vmatpush1.msra.mxu0 0.0
    %1399 = vmatprep.subr.mxu0 0.0
    %1400 = vmatpush1.msra.mxu0 0.0
    %1401 = vmatprep.subr.mxu0 0.0
    %1402 = vmatpush1.msra.mxu0 0.0
    %1403 = vmatprep.subr.mxu0 0.0
    %1404 = vmatpush1.msra.mxu0 0.0
    %1405 = vmatprep.subr.mxu0 0.0
    %1406 = vmatpush1.msra.mxu0 0.0
    %1407 = vmatprep.subr.mxu0 0.0
    %1408 = vmatpush1.msra.mxu0 0.0
    %1409 = vmatprep.subr.mxu0 0.0
    %1410 = vmatpush1.msra.mxu0 0.0
    %1411 = vmatprep.subr.mxu0 0.0
    %1412 = vmatpush1.msra.mxu0 0.0
    %1413 = vmatprep.subr.mxu0 0.0
    %1414 = vmatpush1.msra.mxu0 0.0
    %1415 = vmatprep.subr.mxu0 0.0
    %1416 = vmatpush1.msra.mxu0 0.0
    %1417 = vmatprep.subr.mxu0 0.0
    %1418 = vmatpush1.msra.mxu0 0.0
    %1419 = vmatprep.subr.mxu0 0.0
    %1420 = vmatpush1.msra.mxu0 0.0
    %1421 = vmatprep.subr.mxu0 0.0
    %1422 = vmatpush1.msra.mxu0 0.0
    %1423 = vmatprep.subr.mxu0 0.0
    %1424 = vmatpush1.msra.mxu0 0.0
    %1425 = vmatprep.subr.mxu0 0.0
    %1426 = vmatpush1.msra.mxu0 0.0
    %1427 = vmatprep.subr.mxu0 0.0
    %1428 = vmatpush1.msra.mxu0 0.0
    %1429 = vmatprep.mubr.f32.mxu0 0.0
    %1430 = vmatmul.mubr.f32.gmra.mrb[0].mxu0 %v1363
    %v1431 = vpop.f32.mrb[0].mxu0
    %v1432 = vadd.f32 0.0, %v1431
    %v1433 = vpop.f32.mrb[0].mxu0
    %1434 = vdwg.mxu0
    %v1435 = vadd.f32 %v1361, %v1432
    %v1436 = vxor.u32 %v1435, 2147483648
    %v1437 = vmul.f32 %v1436, 1.442695
    %v1438 = vpow.pop %v1437
    %v1439 = vadd.f32 %v1438, 1.0
    %v1440 = vrcp.pop %v1439
    %v1441 = vmul.f32 1.0, %v1440
    %v1442 = vtanh.pop %v1435
    %1444 = vrot.lane.b32.xlu0 %v1359, 32
    %v1445 = vpop.permute.xlu0 %1444
    %v1447 = vmul.f32 %v1441, %v1445
    %1449 = vrot.lane.b32.xlu0 %v1442, 32
    %v1450 = vpop.permute.xlu0 %1449
    %v1452 = vmul.f32 %v1441, %v1450
    %1454 = vrot.lane.b32.xlu0 %v1452, 32
    %v1455 = vpop.permute.xlu0 %1454
    %v1457 = vadd.f32 %v1447, %v1455
    %v1458 = vtanh.pop %v1457
    %1460 = vrot.lane.b32.xlu0 %v1458, 32
    %v1461 = vpop.permute.xlu0 %1460
    %v1463 = vmul.f32 %v1441, %v1461
    %v1464 = vsel %vm290, 9, 6
    %vm1465 = vcmp.gt.s32.totalorder %v394, %v1464
    %1467 = vrot.lane.b32.xlu0 %v1463, 64
    %v1468 = vpop.permute.xlu0 %1467
    %v1470 = vsel %vm1465, %v1468, 0.0
    %s1471 = scalar_lea.vmem [#allocation9], 18
    %1472 = vst.msk [vmem:[%s1471] sm:$0x3] %vm401, %v1470
    %v1473 = vsel %vm1465, %v1468, %v1354
    %1475 = vrot.lane.b32.xlu0 %v1457, 96
    %v1476 = vpop.permute.xlu0 %1475
    %v1478 = vsel %vm1465, %v1476, %v1359
    %s1479 = scalar_lea.vmem [#allocation2], 20
    %v1480 = vld [vmem:[%s1479] sm:$0x3]
    %v1482 = vsel %vm292, %v1473, 0
    %1484 = vmatprep.subr.mxu0 0.0
    %1485 = vmatpush1.msra.mxu0 %v283
    %1486 = vmatprep.subr.mxu0 0.0
    %1487 = vmatpush1.msra.mxu0 %v284
    %1488 = vmatprep.subr.mxu0 0.0
    %1489 = vmatpush1.msra.mxu0 %v285
    %1490 = vmatprep.subr.mxu0 0.0
    %1491 = vmatpush1.msra.mxu0 %v286
    %1492 = vmatprep.subr.mxu0 0.0
    %1493 = vmatpush1.msra.mxu0 0.0
    %1494 = vmatprep.subr.mxu0 0.0
    %1495 = vmatpush1.msra.mxu0 0.0
    %1496 = vmatprep.subr.mxu0 0.0
    %1497 = vmatpush1.msra.mxu0 0.0
    %1498 = vmatprep.subr.mxu0 0.0
    %1499 = vmatpush1.msra.mxu0 0.0
    %1500 = vmatprep.subr.mxu0 0.0
    %1501 = vmatpush1.msra.mxu0 0.0
    %1502 = vmatprep.subr.mxu0 0.0
    %1503 = vmatpush1.msra.mxu0 0.0
    %1504 = vmatprep.subr.mxu0 0.0
    %1505 = vmatpush1.msra.mxu0 0.0
    %1506 = vmatprep.subr.mxu0 0.0
    %1507 = vmatpush1.msra.mxu0 0.0
    %1508 = vmatprep.subr.mxu0 0.0
    %1509 = vmatpush1.msra.mxu0 0.0
    %1510 = vmatprep.subr.mxu0 0.0
    %1511 = vmatpush1.msra.mxu0 0.0
    %1512 = vmatprep.subr.mxu0 0.0
    %1513 = vmatpush1.msra.mxu0 0.0
    %1514 = vmatprep.subr.mxu0 0.0
    %1515 = vmatpush1.msra.mxu0 0.0
    %1516 = vmatprep.subr.mxu0 0.0
    %1517 = vmatpush1.msra.mxu0 0.0
    %1518 = vmatprep.subr.mxu0 0.0
    %1519 = vmatpush1.msra.mxu0 0.0
    %1520 = vmatprep.subr.mxu0 0.0
    %1521 = vmatpush1.msra.mxu0 0.0
    %1522 = vmatprep.subr.mxu0 0.0
    %1523 = vmatpush1.msra.mxu0 0.0
    %1524 = vmatprep.subr.mxu0 0.0
    %1525 = vmatpush1.msra.mxu0 0.0
    %1526 = vmatprep.subr.mxu0 0.0
    %1527 = vmatpush1.msra.mxu0 0.0
    %1528 = vmatprep.subr.mxu0 0.0
    %1529 = vmatpush1.msra.mxu0 0.0
    %1530 = vmatprep.subr.mxu0 0.0
    %1531 = vmatpush1.msra.mxu0 0.0
    %1532 = vmatprep.subr.mxu0 0.0
    %1533 = vmatpush1.msra.mxu0 0.0
    %1534 = vmatprep.subr.mxu0 0.0
    %1535 = vmatpush1.msra.mxu0 0.0
    %1536 = vmatprep.subr.mxu0 0.0
    %1537 = vmatpush1.msra.mxu0 0.0
    %1538 = vmatprep.subr.mxu0 0.0
    %1539 = vmatpush1.msra.mxu0 0.0
    %1540 = vmatprep.subr.mxu0 0.0
    %1541 = vmatpush1.msra.mxu0 0.0
    %1542 = vmatprep.subr.mxu0 0.0
    %1543 = vmatpush1.msra.mxu0 0.0
    %1544 = vmatprep.subr.mxu0 0.0
    %1545 = vmatpush1.msra.mxu0 0.0
    %1546 = vmatprep.subr.mxu0 0.0
    %1547 = vmatpush1.msra.mxu0 0.0
    %1548 = vmatprep.mubr.f32.mxu0 0.0
    %1549 = vmatmul.mubr.f32.gmra.mrb[0].mxu0 %v1482
    %v1550 = vpop.f32.mrb[0].mxu0
    %v1551 = vadd.f32 0.0, %v1550
    %v1552 = vpop.f32.mrb[0].mxu0
    %1553 = vdwg.mxu0
    %v1554 = vadd.f32 %v1480, %v1551
    %v1555 = vxor.u32 %v1554, 2147483648
    %v1556 = vmul.f32 %v1555, 1.442695
    %v1557 = vpow.pop %v1556
    %v1558 = vadd.f32 %v1557, 1.0
    %v1559 = vrcp.pop %v1558
    %v1560 = vmul.f32 1.0, %v1559
    %v1561 = vtanh.pop %v1554
    %1563 = vrot.lane.b32.xlu0 %v1478, 32
    %v1564 = vpop.permute.xlu0 %1563
    %v1566 = vmul.f32 %v1560, %v1564
    %1568 = vrot.lane.b32.xlu0 %v1561, 32
    %v1569 = vpop.permute.xlu0 %1568
    %v1571 = vmul.f32 %v1560, %v1569
    %1573 = vrot.lane.b32.xlu0 %v1571, 32
    %v1574 = vpop.permute.xlu0 %1573
    %v1576 = vadd.f32 %v1566, %v1574
    %v1577 = vtanh.pop %v1576
    %1579 = vrot.lane.b32.xlu0 %v1577, 32
    %v1580 = vpop.permute.xlu0 %1579
    %v1582 = vmul.f32 %v1560, %v1580
    %v1583 = vsel %vm290, 10, 5
    %vm1584 = vcmp.gt.s32.totalorder %v394, %v1583
    %1586 = vrot.lane.b32.xlu0 %v1582, 64
    %v1587 = vpop.permute.xlu0 %1586
    %v1589 = vsel %vm1584, %v1587, 0.0
    %s1590 = scalar_lea.vmem [#allocation9], 20
    %1591 = vst.msk [vmem:[%s1590] sm:$0x3] %vm401, %v1589
    %v1592 = vsel %vm1584, %v1587, %v1473
    %1594 = vrot.lane.b32.xlu0 %v1576, 96
    %v1595 = vpop.permute.xlu0 %1594
    %v1597 = vsel %vm1584, %v1595, %v1478
    %s1598 = scalar_lea.vmem [#allocation2], 22
    %v1599 = vld [vmem:[%s1598] sm:$0x3]
    %v1601 = vsel %vm292, %v1592, 0
    %1603 = vmatprep.subr.mxu0 0.0
    %1604 = vmatpush1.msra.mxu0 %v283
    %1605 = vmatprep.subr.mxu0 0.0
    %1606 = vmatpush1.msra.mxu0 %v284
    %1607 = vmatprep.subr.mxu0 0.0
    %1608 = vmatpush1.msra.mxu0 %v285
    %1609 = vmatprep.subr.mxu0 0.0
    %1610 = vmatpush1.msra.mxu0 %v286
    %1611 = vmatprep.subr.mxu0 0.0
    %1612 = vmatpush1.msra.mxu0 0.0
    %1613 = vmatprep.subr.mxu0 0.0
    %1614 = vmatpush1.msra.mxu0 0.0
    %1615 = vmatprep.subr.mxu0 0.0
    %1616 = vmatpush1.msra.mxu0 0.0
    %1617 = vmatprep.subr.mxu0 0.0
    %1618 = vmatpush1.msra.mxu0 0.0
    %1619 = vmatprep.subr.mxu0 0.0
    %1620 = vmatpush1.msra.mxu0 0.0
    %1621 = vmatprep.subr.mxu0 0.0
    %1622 = vmatpush1.msra.mxu0 0.0
    %1623 = vmatprep.subr.mxu0 0.0
    %1624 = vmatpush1.msra.mxu0 0.0
    %1625 = vmatprep.subr.mxu0 0.0
    %1626 = vmatpush1.msra.mxu0 0.0
    %1627 = vmatprep.subr.mxu0 0.0
    %1628 = vmatpush1.msra.mxu0 0.0
    %1629 = vmatprep.subr.mxu0 0.0
    %1630 = vmatpush1.msra.mxu0 0.0
    %1631 = vmatprep.subr.mxu0 0.0
    %1632 = vmatpush1.msra.mxu0 0.0
    %1633 = vmatprep.subr.mxu0 0.0
    %1634 = vmatpush1.msra.mxu0 0.0
    %1635 = vmatprep.subr.mxu0 0.0
    %1636 = vmatpush1.msra.mxu0 0.0
    %1637 = vmatprep.subr.mxu0 0.0
    %1638 = vmatpush1.msra.mxu0 0.0
    %1639 = vmatprep.subr.mxu0 0.0
    %1640 = vmatpush1.msra.mxu0 0.0
    %1641 = vmatprep.subr.mxu0 0.0
    %1642 = vmatpush1.msra.mxu0 0.0
    %1643 = vmatprep.subr.mxu0 0.0
    %1644 = vmatpush1.msra.mxu0 0.0
    %1645 = vmatprep.subr.mxu0 0.0
    %1646 = vmatpush1.msra.mxu0 0.0
    %1647 = vmatprep.subr.mxu0 0.0
    %1648 = vmatpush1.msra.mxu0 0.0
    %1649 = vmatprep.subr.mxu0 0.0
    %1650 = vmatpush1.msra.mxu0 0.0
    %1651 = vmatprep.subr.mxu0 0.0
    %1652 = vmatpush1.msra.mxu0 0.0
    %1653 = vmatprep.subr.mxu0 0.0
    %1654 = vmatpush1.msra.mxu0 0.0
    %1655 = vmatprep.subr.mxu0 0.0
    %1656 = vmatpush1.msra.mxu0 0.0
    %1657 = vmatprep.subr.mxu0 0.0
    %1658 = vmatpush1.msra.mxu0 0.0
    %1659 = vmatprep.subr.mxu0 0.0
    %1660 = vmatpush1.msra.mxu0 0.0
    %1661 = vmatprep.subr.mxu0 0.0
    %1662 = vmatpush1.msra.mxu0 0.0
    %1663 = vmatprep.subr.mxu0 0.0
    %1664 = vmatpush1.msra.mxu0 0.0
    %1665 = vmatprep.subr.mxu0 0.0
    %1666 = vmatpush1.msra.mxu0 0.0
    %1667 = vmatprep.mubr.f32.mxu0 0.0
    %1668 = vmatmul.mubr.f32.gmra.mrb[0].mxu0 %v1601
    %v1669 = vpop.f32.mrb[0].mxu0
    %v1670 = vadd.f32 0.0, %v1669
    %v1671 = vpop.f32.mrb[0].mxu0
    %1672 = vdwg.mxu0
    %v1673 = vadd.f32 %v1599, %v1670
    %v1674 = vxor.u32 %v1673, 2147483648
    %v1675 = vmul.f32 %v1674, 1.442695
    %v1676 = vpow.pop %v1675
    %v1677 = vadd.f32 %v1676, 1.0
    %v1678 = vrcp.pop %v1677
    %v1679 = vmul.f32 1.0, %v1678
    %v1680 = vtanh.pop %v1673
    %1682 = vrot.lane.b32.xlu0 %v1597, 32
    %v1683 = vpop.permute.xlu0 %1682
    %v1685 = vmul.f32 %v1679, %v1683
    %1687 = vrot.lane.b32.xlu0 %v1680, 32
    %v1688 = vpop.permute.xlu0 %1687
    %v1690 = vmul.f32 %v1679, %v1688
    %1692 = vrot.lane.b32.xlu0 %v1690, 32
    %v1693 = vpop.permute.xlu0 %1692
    %v1695 = vadd.f32 %v1685, %v1693
    %v1696 = vtanh.pop %v1695
    %1698 = vrot.lane.b32.xlu0 %v1696, 32
    %v1699 = vpop.permute.xlu0 %1698
    %v1701 = vmul.f32 %v1679, %v1699
    %v1702 = vsel %vm290, 11, 4
    %vm1703 = vcmp.gt.s32.totalorder %v394, %v1702
    %1705 = vrot.lane.b32.xlu0 %v1701, 64
    %v1706 = vpop.permute.xlu0 %1705
    %v1708 = vsel %vm1703, %v1706, 0.0
    %s1709 = scalar_lea.vmem [#allocation9], 22
    %1710 = vst.msk [vmem:[%s1709] sm:$0x3] %vm401, %v1708
    %v1711 = vsel %vm1703, %v1706, %v1592
    %1713 = vrot.lane.b32.xlu0 %v1695, 96
    %v1714 = vpop.permute.xlu0 %1713
    %v1716 = vsel %vm1703, %v1714, %v1597
    %s1717 = scalar_lea.vmem [#allocation2], 24
    %v1718 = vld [vmem:[%s1717] sm:$0x3]
    %v1720 = vsel %vm292, %v1711, 0
    %1722 = vmatprep.subr.mxu0 0.0
    %1723 = vmatpush1.msra.mxu0 %v283
    %1724 = vmatprep.subr.mxu0 0.0
    %1725 = vmatpush1.msra.mxu0 %v284
    %1726 = vmatprep.subr.mxu0 0.0
    %1727 = vmatpush1.msra.mxu0 %v285
    %1728 = vmatprep.subr.mxu0 0.0
    %1729 = vmatpush1.msra.mxu0 %v286
    %1730 = vmatprep.subr.mxu0 0.0
    %1731 = vmatpush1.msra.mxu0 0.0
    %1732 = vmatprep.subr.mxu0 0.0
    %1733 = vmatpush1.msra.mxu0 0.0
    %1734 = vmatprep.subr.mxu0 0.0
    %1735 = vmatpush1.msra.mxu0 0.0
    %1736 = vmatprep.subr.mxu0 0.0
    %1737 = vmatpush1.msra.mxu0 0.0
    %1738 = vmatprep.subr.mxu0 0.0
    %1739 = vmatpush1.msra.mxu0 0.0
    %1740 = vmatprep.subr.mxu0 0.0
    %1741 = vmatpush1.msra.mxu0 0.0
    %1742 = vmatprep.subr.mxu0 0.0
    %1743 = vmatpush1.msra.mxu0 0.0
    %1744 = vmatprep.subr.mxu0 0.0
    %1745 = vmatpush1.msra.mxu0 0.0
    %1746 = vmatprep.subr.mxu0 0.0
    %1747 = vmatpush1.msra.mxu0 0.0
    %1748 = vmatprep.subr.mxu0 0.0
    %1749 = vmatpush1.msra.mxu0 0.0
    %1750 = vmatprep.subr.mxu0 0.0
    %1751 = vmatpush1.msra.mxu0 0.0
    %1752 = vmatprep.subr.mxu0 0.0
    %1753 = vmatpush1.msra.mxu0 0.0
    %1754 = vmatprep.subr.mxu0 0.0
    %1755 = vmatpush1.msra.mxu0 0.0
    %1756 = vmatprep.subr.mxu0 0.0
    %1757 = vmatpush1.msra.mxu0 0.0
    %1758 = vmatprep.subr.mxu0 0.0
    %1759 = vmatpush1.msra.mxu0 0.0
    %1760 = vmatprep.subr.mxu0 0.0
    %1761 = vmatpush1.msra.mxu0 0.0
    %1762 = vmatprep.subr.mxu0 0.0
    %1763 = vmatpush1.msra.mxu0 0.0
    %1764 = vmatprep.subr.mxu0 0.0
    %1765 = vmatpush1.msra.mxu0 0.0
    %1766 = vmatprep.subr.mxu0 0.0
    %1767 = vmatpush1.msra.mxu0 0.0
    %1768 = vmatprep.subr.mxu0 0.0
    %1769 = vmatpush1.msra.mxu0 0.0
    %1770 = vmatprep.subr.mxu0 0.0
    %1771 = vmatpush1.msra.mxu0 0.0
    %1772 = vmatprep.subr.mxu0 0.0
    %1773 = vmatpush1.msra.mxu0 0.0
    %1774 = vmatprep.subr.mxu0 0.0
    %1775 = vmatpush1.msra.mxu0 0.0
    %1776 = vmatprep.subr.mxu0 0.0
    %1777 = vmatpush1.msra.mxu0 0.0
    %1778 = vmatprep.subr.mxu0 0.0
    %1779 = vmatpush1.msra.mxu0 0.0
    %1780 = vmatprep.subr.mxu0 0.0
    %1781 = vmatpush1.msra.mxu0 0.0
    %1782 = vmatprep.subr.mxu0 0.0
    %1783 = vmatpush1.msra.mxu0 0.0
    %1784 = vmatprep.subr.mxu0 0.0
    %1785 = vmatpush1.msra.mxu0 0.0
    %1786 = vmatprep.mubr.f32.mxu0 0.0
    %1787 = vmatmul.mubr.f32.gmra.mrb[0].mxu0 %v1720
    %v1788 = vpop.f32.mrb[0].mxu0
    %v1789 = vadd.f32 0.0, %v1788
    %v1790 = vpop.f32.mrb[0].mxu0
    %1791 = vdwg.mxu0
    %v1792 = vadd.f32 %v1718, %v1789
    %v1793 = vxor.u32 %v1792, 2147483648
    %v1794 = vmul.f32 %v1793, 1.442695
    %v1795 = vpow.pop %v1794
    %v1796 = vadd.f32 %v1795, 1.0
    %v1797 = vrcp.pop %v1796
    %v1798 = vmul.f32 1.0, %v1797
    %v1799 = vtanh.pop %v1792
    %1801 = vrot.lane.b32.xlu0 %v1716, 32
    %v1802 = vpop.permute.xlu0 %1801
    %v1804 = vmul.f32 %v1798, %v1802
    %1806 = vrot.lane.b32.xlu0 %v1799, 32
    %v1807 = vpop.permute.xlu0 %1806
    %v1809 = vmul.f32 %v1798, %v1807
    %1811 = vrot.lane.b32.xlu0 %v1809, 32
    %v1812 = vpop.permute.xlu0 %1811
    %v1814 = vadd.f32 %v1804, %v1812
    %v1815 = vtanh.pop %v1814
    %1817 = vrot.lane.b32.xlu0 %v1815, 32
    %v1818 = vpop.permute.xlu0 %1817
    %v1820 = vmul.f32 %v1798, %v1818
    %v1821 = vsel %vm290, 12, 3
    %vm1822 = vcmp.gt.s32.totalorder %v394, %v1821
    %1824 = vrot.lane.b32.xlu0 %v1820, 64
    %v1825 = vpop.permute.xlu0 %1824
    %v1827 = vsel %vm1822, %v1825, 0.0
    %s1828 = scalar_lea.vmem [#allocation9], 24
    %1829 = vst.msk [vmem:[%s1828] sm:$0x3] %vm401, %v1827
    %v1830 = vsel %vm1822, %v1825, %v1711
    %1832 = vrot.lane.b32.xlu0 %v1814, 96
    %v1833 = vpop.permute.xlu0 %1832
    %v1835 = vsel %vm1822, %v1833, %v1716
    %s1836 = scalar_lea.vmem [#allocation2], 26
    %v1837 = vld [vmem:[%s1836] sm:$0x3]
    %v1839 = vsel %vm292, %v1830, 0
    %1841 = vmatprep.subr.mxu0 0.0
    %1842 = vmatpush1.msra.mxu0 %v283
    %1843 = vmatprep.subr.mxu0 0.0
    %1844 = vmatpush1.msra.mxu0 %v284
    %1845 = vmatprep.subr.mxu0 0.0
    %1846 = vmatpush1.msra.mxu0 %v285
    %1847 = vmatprep.subr.mxu0 0.0
    %1848 = vmatpush1.msra.mxu0 %v286
    %1849 = vmatprep.subr.mxu0 0.0
    %1850 = vmatpush1.msra.mxu0 0.0
    %1851 = vmatprep.subr.mxu0 0.0
    %1852 = vmatpush1.msra.mxu0 0.0
    %1853 = vmatprep.subr.mxu0 0.0
    %1854 = vmatpush1.msra.mxu0 0.0
    %1855 = vmatprep.subr.mxu0 0.0
    %1856 = vmatpush1.msra.mxu0 0.0
    %1857 = vmatprep.subr.mxu0 0.0
    %1858 = vmatpush1.msra.mxu0 0.0
    %1859 = vmatprep.subr.mxu0 0.0
    %1860 = vmatpush1.msra.mxu0 0.0
    %1861 = vmatprep.subr.mxu0 0.0
    %1862 = vmatpush1.msra.mxu0 0.0
    %1863 = vmatprep.subr.mxu0 0.0
    %1864 = vmatpush1.msra.mxu0 0.0
    %1865 = vmatprep.subr.mxu0 0.0
    %1866 = vmatpush1.msra.mxu0 0.0
    %1867 = vmatprep.subr.mxu0 0.0
    %1868 = vmatpush1.msra.mxu0 0.0
    %1869 = vmatprep.subr.mxu0 0.0
    %1870 = vmatpush1.msra.mxu0 0.0
    %1871 = vmatprep.subr.mxu0 0.0
    %1872 = vmatpush1.msra.mxu0 0.0
    %1873 = vmatprep.subr.mxu0 0.0
    %1874 = vmatpush1.msra.mxu0 0.0
    %1875 = vmatprep.subr.mxu0 0.0
    %1876 = vmatpush1.msra.mxu0 0.0
    %1877 = vmatprep.subr.mxu0 0.0
    %1878 = vmatpush1.msra.mxu0 0.0
    %1879 = vmatprep.subr.mxu0 0.0
    %1880 = vmatpush1.msra.mxu0 0.0
    %1881 = vmatprep.subr.mxu0 0.0
    %1882 = vmatpush1.msra.mxu0 0.0
    %1883 = vmatprep.subr.mxu0 0.0
    %1884 = vmatpush1.msra.mxu0 0.0
    %1885 = vmatprep.subr.mxu0 0.0
    %1886 = vmatpush1.msra.mxu0 0.0
    %1887 = vmatprep.subr.mxu0 0.0
    %1888 = vmatpush1.msra.mxu0 0.0
    %1889 = vmatprep.subr.mxu0 0.0
    %1890 = vmatpush1.msra.mxu0 0.0
    %1891 = vmatprep.subr.mxu0 0.0
    %1892 = vmatpush1.msra.mxu0 0.0
    %1893 = vmatprep.subr.mxu0 0.0
    %1894 = vmatpush1.msra.mxu0 0.0
    %1895 = vmatprep.subr.mxu0 0.0
    %1896 = vmatpush1.msra.mxu0 0.0
    %1897 = vmatprep.subr.mxu0 0.0
    %1898 = vmatpush1.msra.mxu0 0.0
    %1899 = vmatprep.subr.mxu0 0.0
    %1900 = vmatpush1.msra.mxu0 0.0
    %1901 = vmatprep.subr.mxu0 0.0
    %1902 = vmatpush1.msra.mxu0 0.0
    %1903 = vmatprep.subr.mxu0 0.0
    %1904 = vmatpush1.msra.mxu0 0.0
    %1905 = vmatprep.mubr.f32.mxu0 0.0
    %1906 = vmatmul.mubr.f32.gmra.mrb[0].mxu0 %v1839
    %v1907 = vpop.f32.mrb[0].mxu0
    %v1908 = vadd.f32 0.0, %v1907
    %v1909 = vpop.f32.mrb[0].mxu0
    %1910 = vdwg.mxu0
    %v1911 = vadd.f32 %v1837, %v1908
    %v1912 = vxor.u32 %v1911, 2147483648
    %v1913 = vmul.f32 %v1912, 1.442695
    %v1914 = vpow.pop %v1913
    %v1915 = vadd.f32 %v1914, 1.0
    %v1916 = vrcp.pop %v1915
    %v1917 = vmul.f32 1.0, %v1916
    %v1918 = vtanh.pop %v1911
    %1920 = vrot.lane.b32.xlu0 %v1835, 32
    %v1921 = vpop.permute.xlu0 %1920
    %v1923 = vmul.f32 %v1917, %v1921
    %1925 = vrot.lane.b32.xlu0 %v1918, 32
    %v1926 = vpop.permute.xlu0 %1925
    %v1928 = vmul.f32 %v1917, %v1926
    %1930 = vrot.lane.b32.xlu0 %v1928, 32
    %v1931 = vpop.permute.xlu0 %1930
    %v1933 = vadd.f32 %v1923, %v1931
    %v1934 = vtanh.pop %v1933
    %1936 = vrot.lane.b32.xlu0 %v1934, 32
    %v1937 = vpop.permute.xlu0 %1936
    %v1939 = vmul.f32 %v1917, %v1937
    %v1940 = vsel %vm290, 13, 2
    %vm1941 = vcmp.gt.s32.totalorder %v394, %v1940
    %1943 = vrot.lane.b32.xlu0 %v1939, 64
    %v1944 = vpop.permute.xlu0 %1943
    %v1946 = vsel %vm1941, %v1944, 0.0
    %s1947 = scalar_lea.vmem [#allocation9], 26
    %1948 = vst.msk [vmem:[%s1947] sm:$0x3] %vm401, %v1946
    %v1949 = vsel %vm1941, %v1944, %v1830
    %1951 = vrot.lane.b32.xlu0 %v1933, 96
    %v1952 = vpop.permute.xlu0 %1951
    %v1954 = vsel %vm1941, %v1952, %v1835
    %s1955 = scalar_lea.vmem [#allocation2], 28
    %v1956 = vld [vmem:[%s1955] sm:$0x3]
    %v1958 = vsel %vm292, %v1949, 0
    %1960 = vmatprep.subr.mxu0 0.0
    %1961 = vmatpush1.msra.mxu0 %v283
    %1962 = vmatprep.subr.mxu0 0.0
    %1963 = vmatpush1.msra.mxu0 %v284
    %1964 = vmatprep.subr.mxu0 0.0
    %1965 = vmatpush1.msra.mxu0 %v285
    %1966 = vmatprep.subr.mxu0 0.0
    %1967 = vmatpush1.msra.mxu0 %v286
    %1968 = vmatprep.subr.mxu0 0.0
    %1969 = vmatpush1.msra.mxu0 0.0
    %1970 = vmatprep.subr.mxu0 0.0
    %1971 = vmatpush1.msra.mxu0 0.0
    %1972 = vmatprep.subr.mxu0 0.0
    %1973 = vmatpush1.msra.mxu0 0.0
    %1974 = vmatprep.subr.mxu0 0.0
    %1975 = vmatpush1.msra.mxu0 0.0
    %1976 = vmatprep.subr.mxu0 0.0
    %1977 = vmatpush1.msra.mxu0 0.0
    %1978 = vmatprep.subr.mxu0 0.0
    %1979 = vmatpush1.msra.mxu0 0.0
    %1980 = vmatprep.subr.mxu0 0.0
    %1981 = vmatpush1.msra.mxu0 0.0
    %1982 = vmatprep.subr.mxu0 0.0
    %1983 = vmatpush1.msra.mxu0 0.0
    %1984 = vmatprep.subr.mxu0 0.0
    %1985 = vmatpush1.msra.mxu0 0.0
    %1986 = vmatprep.subr.mxu0 0.0
    %1987 = vmatpush1.msra.mxu0 0.0
    %1988 = vmatprep.subr.mxu0 0.0
    %1989 = vmatpush1.msra.mxu0 0.0
    %1990 = vmatprep.subr.mxu0 0.0
    %1991 = vmatpush1.msra.mxu0 0.0
    %1992 = vmatprep.subr.mxu0 0.0
    %1993 = vmatpush1.msra.mxu0 0.0
    %1994 = vmatprep.subr.mxu0 0.0
    %1995 = vmatpush1.msra.mxu0 0.0
    %1996 = vmatprep.subr.mxu0 0.0
    %1997 = vmatpush1.msra.mxu0 0.0
    %1998 = vmatprep.subr.mxu0 0.0
    %1999 = vmatpush1.msra.mxu0 0.0
    %2000 = vmatprep.subr.mxu0 0.0
    %2001 = vmatpush1.msra.mxu0 0.0
    %2002 = vmatprep.subr.mxu0 0.0
    %2003 = vmatpush1.msra.mxu0 0.0
    %2004 = vmatprep.subr.mxu0 0.0
    %2005 = vmatpush1.msra.mxu0 0.0
    %2006 = vmatprep.subr.mxu0 0.0
    %2007 = vmatpush1.msra.mxu0 0.0
    %2008 = vmatprep.subr.mxu0 0.0
    %2009 = vmatpush1.msra.mxu0 0.0
    %2010 = vmatprep.subr.mxu0 0.0
    %2011 = vmatpush1.msra.mxu0 0.0
    %2012 = vmatprep.subr.mxu0 0.0
    %2013 = vmatpush1.msra.mxu0 0.0
    %2014 = vmatprep.subr.mxu0 0.0
    %2015 = vmatpush1.msra.mxu0 0.0
    %2016 = vmatprep.subr.mxu0 0.0
    %2017 = vmatpush1.msra.mxu0 0.0
    %2018 = vmatprep.subr.mxu0 0.0
    %2019 = vmatpush1.msra.mxu0 0.0
    %2020 = vmatprep.subr.mxu0 0.0
    %2021 = vmatpush1.msra.mxu0 0.0
    %2022 = vmatprep.subr.mxu0 0.0
    %2023 = vmatpush1.msra.mxu0 0.0
    %2024 = vmatprep.mubr.f32.mxu0 0.0
    %2025 = vmatmul.mubr.f32.gmra.mrb[0].mxu0 %v1958
    %v2026 = vpop.f32.mrb[0].mxu0
    %v2027 = vadd.f32 0.0, %v2026
    %v2028 = vpop.f32.mrb[0].mxu0
    %2029 = vdwg.mxu0
    %v2030 = vadd.f32 %v1956, %v2027
    %v2031 = vxor.u32 %v2030, 2147483648
    %v2032 = vmul.f32 %v2031, 1.442695
    %v2033 = vpow.pop %v2032
    %v2034 = vadd.f32 %v2033, 1.0
    %v2035 = vrcp.pop %v2034
    %v2036 = vmul.f32 1.0, %v2035
    %v2037 = vtanh.pop %v2030
    %2039 = vrot.lane.b32.xlu0 %v1954, 32
    %v2040 = vpop.permute.xlu0 %2039
    %v2042 = vmul.f32 %v2036, %v2040
    %2044 = vrot.lane.b32.xlu0 %v2037, 32
    %v2045 = vpop.permute.xlu0 %2044
    %v2047 = vmul.f32 %v2036, %v2045
    %2049 = vrot.lane.b32.xlu0 %v2047, 32
    %v2050 = vpop.permute.xlu0 %2049
    %v2052 = vadd.f32 %v2042, %v2050
    %v2053 = vtanh.pop %v2052
    %2055 = vrot.lane.b32.xlu0 %v2053, 32
    %v2056 = vpop.permute.xlu0 %2055
    %v2058 = vmul.f32 %v2036, %v2056
    %v2059 = vsel %vm290, 14, 1
    %vm2060 = vcmp.gt.s32.totalorder %v394, %v2059
    %2062 = vrot.lane.b32.xlu0 %v2058, 64
    %v2063 = vpop.permute.xlu0 %2062
    %v2065 = vsel %vm2060, %v2063, 0.0
    %s2066 = scalar_lea.vmem [#allocation9], 28
    %2067 = vst.msk [vmem:[%s2066] sm:$0x3] %vm401, %v2065
    %v2068 = vsel %vm2060, %v2063, %v1949
    %2070 = vrot.lane.b32.xlu0 %v2052, 96
    %v2071 = vpop.permute.xlu0 %2070
    %v2073 = vsel %vm2060, %v2071, %v1954
    %s2074 = scalar_lea.vmem [#allocation2], 30
    %v2075 = vld [vmem:[%s2074] sm:$0x3]
    %v2077 = vsel %vm292, %v2068, 0
    %2079 = vmatprep.subr.mxu0 0.0
    %2080 = vmatpush1.msra.mxu0 %v283
    %2081 = vmatprep.subr.mxu0 0.0
    %2082 = vmatpush1.msra.mxu0 %v284
    %2083 = vmatprep.subr.mxu0 0.0
    %2084 = vmatpush1.msra.mxu0 %v285
    %2085 = vmatprep.subr.mxu0 0.0
    %2086 = vmatpush1.msra.mxu0 %v286
    %2087 = vmatprep.subr.mxu0 0.0
    %2088 = vmatpush1.msra.mxu0 0.0
    %2089 = vmatprep.subr.mxu0 0.0
    %2090 = vmatpush1.msra.mxu0 0.0
    %2091 = vmatprep.subr.mxu0 0.0
    %2092 = vmatpush1.msra.mxu0 0.0
    %2093 = vmatprep.subr.mxu0 0.0
    %2094 = vmatpush1.msra.mxu0 0.0
    %2095 = vmatprep.subr.mxu0 0.0
    %2096 = vmatpush1.msra.mxu0 0.0
    %2097 = vmatprep.subr.mxu0 0.0
    %2098 = vmatpush1.msra.mxu0 0.0
    %2099 = vmatprep.subr.mxu0 0.0
    %2100 = vmatpush1.msra.mxu0 0.0
    %2101 = vmatprep.subr.mxu0 0.0
    %2102 = vmatpush1.msra.mxu0 0.0
    %2103 = vmatprep.subr.mxu0 0.0
    %2104 = vmatpush1.msra.mxu0 0.0
    %2105 = vmatprep.subr.mxu0 0.0
    %2106 = vmatpush1.msra.mxu0 0.0
    %2107 = vmatprep.subr.mxu0 0.0
    %2108 = vmatpush1.msra.mxu0 0.0
    %2109 = vmatprep.subr.mxu0 0.0
    %2110 = vmatpush1.msra.mxu0 0.0
    %2111 = vmatprep.subr.mxu0 0.0
    %2112 = vmatpush1.msra.mxu0 0.0
    %2113 = vmatprep.subr.mxu0 0.0
    %2114 = vmatpush1.msra.mxu0 0.0
    %2115 = vmatprep.subr.mxu0 0.0
    %2116 = vmatpush1.msra.mxu0 0.0
    %2117 = vmatprep.subr.mxu0 0.0
    %2118 = vmatpush1.msra.mxu0 0.0
    %2119 = vmatprep.subr.mxu0 0.0
    %2120 = vmatpush1.msra.mxu0 0.0
    %2121 = vmatprep.subr.mxu0 0.0
    %2122 = vmatpush1.msra.mxu0 0.0
    %2123 = vmatprep.subr.mxu0 0.0
    %2124 = vmatpush1.msra.mxu0 0.0
    %2125 = vmatprep.subr.mxu0 0.0
    %2126 = vmatpush1.msra.mxu0 0.0
    %2127 = vmatprep.subr.mxu0 0.0
    %2128 = vmatpush1.msra.mxu0 0.0
    %2129 = vmatprep.subr.mxu0 0.0
    %2130 = vmatpush1.msra.mxu0 0.0
    %2131 = vmatprep.subr.mxu0 0.0
    %2132 = vmatpush1.msra.mxu0 0.0
    %2133 = vmatprep.subr.mxu0 0.0
    %2134 = vmatpush1.msra.mxu0 0.0
    %2135 = vmatprep.subr.mxu0 0.0
    %2136 = vmatpush1.msra.mxu0 0.0
    %2137 = vmatprep.subr.mxu0 0.0
    %2138 = vmatpush1.msra.mxu0 0.0
    %2139 = vmatprep.subr.mxu0 0.0
    %2140 = vmatpush1.msra.mxu0 0.0
    %2141 = vmatprep.subr.mxu0 0.0
    %2142 = vmatpush1.msra.mxu0 0.0
    %2143 = vmatprep.mubr.f32.mxu0 0.0
    %2144 = vmatmul.mubr.f32.gmra.mrb[0].mxu0 %v2077
    %v2145 = vpop.f32.mrb[0].mxu0
    %v2146 = vadd.f32 0.0, %v2145
    %v2147 = vpop.f32.mrb[0].mxu0
    %2148 = vdwg.mxu0
    %v2149 = vadd.f32 %v2075, %v2146
    %v2150 = vxor.u32 %v2149, 2147483648
    %v2151 = vmul.f32 %v2150, 1.442695
    %v2152 = vpow.pop %v2151
    %v2153 = vadd.f32 %v2152, 1.0
    %v2154 = vrcp.pop %v2153
    %v2155 = vmul.f32 1.0, %v2154
    %v2156 = vtanh.pop %v2149
    %2158 = vrot.lane.b32.xlu0 %v2073, 32
    %v2159 = vpop.permute.xlu0 %2158
    %v2161 = vmul.f32 %v2155, %v2159
    %2163 = vrot.lane.b32.xlu0 %v2156, 32
    %v2164 = vpop.permute.xlu0 %2163
    %v2166 = vmul.f32 %v2155, %v2164
    %2168 = vrot.lane.b32.xlu0 %v2166, 32
    %v2169 = vpop.permute.xlu0 %2168
    %v2171 = vadd.f32 %v2161, %v2169
    %v2172 = vtanh.pop %v2171
    %2174 = vrot.lane.b32.xlu0 %v2172, 32
    %v2175 = vpop.permute.xlu0 %2174
    %v2177 = vmul.f32 %v2155, %v2175
    %v2178 = vsel %vm290, 15, 0
    %vm2179 = vcmp.gt.s32.totalorder %v394, %v2178
    %2181 = vrot.lane.b32.xlu0 %v2177, 64
    %v2182 = vpop.permute.xlu0 %2181
    %v2184 = vsel %vm2179, %v2182, 0.0
    %s2185 = scalar_lea.vmem [#allocation9], 30
    %2186 = vst.msk [vmem:[%s2185] sm:$0x3] %vm401, %v2184
    // Predicated region
    $region34: #{tpu_custom_call.1} parent=1 // pred_check
      _
    $region35: #{tpu_custom_call.1} parent=1 // pred_check_branch
      %2188 = sbr.rel (0) target = $region37
    $region36: #{tpu_custom_call.1} parent=1 // pred_region
      %s2190 = ssub.s32 512, 512
      %2191 = vsyncadd [#allocation5], %s2190
      %s2192 = sshll.u32 [#allocation9], 4
      %s2193 = int_to_ptr.vmem [resolvable:$true] %s2192
      %2198 = dma.vmem_to_hbm [thread:$0]  %s2193, 512, %s5, [#allocation5], 32, 32, 2
    $region37: #{tpu_custom_call.1} parent=1 // pred_fallthru
      _
    // Predicated region
    $region38: #{tpu_custom_call.1} parent=1 // pred_check
      _
    $region39: #{tpu_custom_call.1} parent=1 // pred_check_branch
      %2200 = sbr.rel (0) target = $region41
    $region40: #{tpu_custom_call.1} parent=1 // pred_region
      %2201 = dma.done [#allocation5], 512
    $region41: #{tpu_custom_call.1} parent=1 // pred_fallthru
      _
    %2202 = vsyncpa [#allocation4], 1
    %2203 = vsyncpa [#allocation7], 1
    %2204 = vsyncpa [#allocation5], 1

</llo_original>
